<compile_context>
chip_gen: v7x
topology: tpu7x:2x2x1
jax: 0.10.0
libtpu: 0.0.40
codegen_flags: <defaults>
</compile_context>

<pallas_src>
import functools
import math

import jax
import jax.numpy as jnp
from jax.experimental import pallas as pl
from jax.experimental.pallas import tpu as pltpu


# --------------------------- Kernel helpers ----------------------------------

def _layernorm(x, g, b, eps):
    mu = jnp.mean(x, axis=-1, keepdims=True)
    var = jnp.mean(jnp.square(x - mu), axis=-1, keepdims=True)
    return (x - mu) * jax.lax.rsqrt(var + eps) * g + b


def _gelu_tanh(x):
    # TODO(synk): erf-GELU would be bit-closer to HuggingFace; tanh approx kept for
    # guaranteed Mosaic lowering (matches previously validated kernel).
    return 0.5 * x * (1.0 + jnp.tanh(0.7978845608028654 * (x + 0.044715 * x * x * x)))


# --------------------------- Encoder kernel (grid = (B, L)) -------------------

def _bert_layer_kernel(emb_ref, bias_ref, emb_ln_g_ref, emb_ln_b_ref,
                       wqkv_ref, bqkv_ref, wo_ref, bo_ref,
                       ln1_g_ref, ln1_b_ref, wi_ref, bi_ref,
                       wo2_ref, bo2_ref, ln2_g_ref, ln2_b_ref,
                       cls_ref, x_ref, ctx_ref,
                       *, num_heads, head_dim, hidden, eps):
    """One grid step = (batch element b, encoder layer l).  x_ref persists over l."""
    l = pl.program_id(1)
    last = pl.num_programs(1) - 1
    H, Dh = hidden, head_dim
    scale = 1.0 / math.sqrt(Dh)

    @pl.when(l == 0)
    def _():
        # Embedding LayerNorm (Dropout(0.1) after embeddings is identity in eval mode).
        x_ref[...] = _layernorm(emb_ref[0], emb_ln_g_ref[...], emb_ln_b_ref[...], eps)

    x = x_ref[...]                                   # (S, H) f32, resident across layers
    bias = bias_ref[0]                               # (1, S) additive mask bias (f32)

    # ---- Self-attention: fused QKV projection (bf16 MXU operands, f32 accumulate) ----
    qkv = jnp.dot(x.astype(jnp.bfloat16), wqkv_ref[0],
                  preferred_element_type=jnp.float32) + bqkv_ref[0]       # (S, 3H) f32

    # Per-head softmax(QK^T * scale + bias) @ V written into a (S, H) ctx scratch, then
    # ONE full-K output-projection matmul (feeds the whole MXU instead of nh K=Dh dots).
    # TODO(synk): at BERT-base scale (Dh=64) process heads in 128-lane-aligned pairs
    # and bound the loop with lax.fori_loop(unroll=True); nh is tiny here (2).
    for h in range(num_heads):
        qh = qkv[:, h * Dh:(h + 1) * Dh].astype(jnp.bfloat16)
        kh = qkv[:, H + h * Dh:H + (h + 1) * Dh].astype(jnp.bfloat16)
        vh = qkv[:, 2 * H + h * Dh:2 * H + (h + 1) * Dh].astype(jnp.bfloat16)
        s = jax.lax.dot_general(qh, kh, (((1,), (1,)), ((), ())),
                                preferred_element_type=jnp.float32)       # (S, S) f32
        s = s * scale + bias                                              # mask in f32
        m = jnp.max(s, axis=-1, keepdims=True)
        p = jnp.exp(s - m)
        p = p * pl.reciprocal(jnp.sum(p, axis=-1, keepdims=True), approx=True)
        ctx_ref[:, h * Dh:(h + 1) * Dh] = jnp.dot(
            p.astype(jnp.bfloat16), vh, preferred_element_type=jnp.float32)

    attn_out = jnp.dot(ctx_ref[...].astype(jnp.bfloat16), wo_ref[0],
                       preferred_element_type=jnp.float32) + bo_ref[0]
    x = _layernorm(attn_out + x, ln1_g_ref[0], ln1_b_ref[0], eps)

    # ---- Feed-forward block ----
    inter = jnp.dot(x.astype(jnp.bfloat16), wi_ref[0],
                    preferred_element_type=jnp.float32) + bi_ref[0]
    inter = _gelu_tanh(inter)
    ffn = jnp.dot(inter.astype(jnp.bfloat16), wo2_ref[0],
                  preferred_element_type=jnp.float32) + bo2_ref[0]
    x = _layernorm(ffn + x, ln2_g_ref[0], ln2_b_ref[0], eps)
    x_ref[...] = x

    @pl.when(l == last)
    def _():
        cls_ref[0] = x[0:1, :]                       # [CLS] hidden for this sequence


# --------------------------- Pooler + classifier kernel (all B at once) -------

def _pool_cls_kernel(cls_ref, pw_ref, pb_ref, cw_ref, cb_ref, out_ref):
    # Pooler: dense + tanh on CLS rows; Dropout(0.1) before classifier is identity.
    pooled = jnp.tanh(jnp.dot(cls_ref[...].astype(jnp.bfloat16), pw_ref[...],
                              preferred_element_type=jnp.float32) + pb_ref[...])
    out_ref[...] = jnp.dot(pooled.astype(jnp.bfloat16), cw_ref[...],
                           preferred_element_type=jnp.float32) + cb_ref[...]


# --------------------------- Parameters --------------------------------------

def init_params(key, cfg):
    H, I, L = cfg["hidden"], cfg["intermediate"], cfg["layers"]
    std = 0.02
    keys = iter(jax.random.split(key, 256))

    def w(shape):
        return (std * jax.random.normal(next(keys), shape)).astype(jnp.float32)

    zeros = lambda n: jnp.zeros((n,), jnp.float32)
    ones = lambda n: jnp.ones((n,), jnp.float32)

    params = {
        "word_emb": w((cfg["vocab"], H)),
        "pos_emb": w((cfg["max_pos"], H)),
        "type_emb": w((2, H)),
        "emb_ln_g": ones(H), "emb_ln_b": zeros(H),
        "layers": [],
        "pool_w": w((H, H)), "pool_b": zeros(H),
        "cls_w": w((H, cfg["num_classes"])), "cls_b": zeros(cfg["num_classes"]),
    }
    for _ in range(L):
        params["layers"].append({
            "wq": w((H, H)), "bq": zeros(H),
            "wk": w((H, H)), "bk": zeros(H),
            "wv": w((H, H)), "bv": zeros(H),
            "wo": w((H, H)), "bo": zeros(H),
            "ln1_g": ones(H), "ln1_b": zeros(H),
            "wi": w((H, I)), "bi": zeros(I),
            "wo2": w((I, H)), "bo2": zeros(H),
            "ln2_g": ones(H), "ln2_b": zeros(H),
        })
    return params


def prepare_params(params, cfg):
    """One-time weight prep: stack per-layer weights along L, fuse Q|K|V, cast MXU
    operands to bf16.  Done once (not per forward call) so no per-step HBM concat."""
    H, I, L = cfg["hidden"], cfg["intermediate"], cfg["layers"]
    Ncls = cfg["num_classes"]
    layers = params["layers"]
    bf = jnp.bfloat16
    stack = lambda n: jnp.stack([lyr[n] for lyr in layers])
    return {
        "word_emb": params["word_emb"],
        "pos_emb": params["pos_emb"],
        "type_emb": params["type_emb"],
        "emb_ln_g": params["emb_ln_g"].reshape(1, H),
        "emb_ln_b": params["emb_ln_b"].reshape(1, H),
        "wqkv": jnp.stack([jnp.concatenate([l["wq"], l["wk"], l["wv"]], axis=1)
                           for l in layers]).astype(bf),                 # (L, H, 3H)
        "bqkv": jnp.stack([jnp.concatenate([l["bq"], l["bk"], l["bv"]])[None, :]
                           for l in layers]),                            # (L, 1, 3H)
        "wo": stack("wo").astype(bf),                                    # (L, H, H)
        "bo": stack("bo").reshape(L, 1, H),
        "ln1_g": stack("ln1_g").reshape(L, 1, H),
        "ln1_b": stack("ln1_b").reshape(L, 1, H),
        "wi": stack("wi").astype(bf),                                    # (L, H, I)
        "bi": stack("bi").reshape(L, 1, I),
        "wo2": stack("wo2").astype(bf),                                  # (L, I, H)
        "bo2": stack("bo2").reshape(L, 1, H),
        "ln2_g": stack("ln2_g").reshape(L, 1, H),
        "ln2_b": stack("ln2_b").reshape(L, 1, H),
        "pool_w": params["pool_w"].astype(bf),
        "pool_b": params["pool_b"].reshape(1, H),
        "cls_w": params["cls_w"].astype(bf),
        "cls_b": params["cls_b"].reshape(1, Ncls),
    }


# --------------------------- Forward pass (wrapper) ---------------------------

def bert_classifier_forward(prep, input_ids, attention_mask, cfg):
    B, S = input_ids.shape
    H, I, L = cfg["hidden"], cfg["intermediate"], cfg["layers"]
    nh = cfg["heads"]
    Dh = H // nh
    Ncls = cfg["num_classes"]

    # Embedding gather is JAX glue (token-id gather); the sum feeds the fused kernel.
    word = jnp.take(prep["word_emb"], input_ids, axis=0)               # (B, S, H)
    pos = prep["pos_emb"][:S][None, :, :]                              # (1, S, H)
    tok = prep["type_emb"][0][None, None, :]                           # token_type_ids=0
    emb = (word + pos + tok).astype(jnp.float32)                       # (B, S, H)

    # Extended attention mask: (1 - mask) * -10000, shared across heads/rows (f32).
    mask_bias = ((1.0 - attention_mask.astype(jnp.float32)) * -10000.0).reshape(B, 1, S)

    kernel = functools.partial(_bert_layer_kernel, num_heads=nh, head_dim=Dh,
                               hidden=H, eps=1e-12)

    def per_layer(shape):        # weights streamed one layer per grid step
        return pl.BlockSpec((1,) + shape, lambda b, l: (l,) + (0,) * len(shape))

    def invariant(shape):        # grid-invariant small params
        return pl.BlockSpec(shape, lambda b, l: (0,) * len(shape))

    # TODO(synk): for small S / large B, fold several sequences into one grid step
    # (block (Bblk, S, H) reshaped to (Bblk*S, H)) to fill MXU sublanes.
    cls_hidden = pl.pallas_call(
        kernel,
        grid=(B, L),
        out_shape=jax.ShapeDtypeStruct((B, 1, H), jnp.float32),
        in_specs=[
            pl.BlockSpec((1, S, H), lambda b, l: (b, 0, 0)),           # summed embeddings
            pl.BlockSpec((1, 1, S), lambda b, l: (b, 0, 0)),           # mask bias
            invariant((1, H)), invariant((1, H)),                      # emb LayerNorm
            per_layer((H, 3 * H)), per_layer((1, 3 * H)),              # fused QKV
            per_layer((H, H)), per_layer((1, H)),                      # attn out proj
            per_layer((1, H)), per_layer((1, H)),                      # ln1
            per_layer((H, I)), per_layer((1, I)),                      # ffn in
            per_layer((I, H)), per_layer((1, H)),                      # ffn out
            per_layer((1, H)), per_layer((1, H)),                      # ln2
        ],
        out_specs=pl.BlockSpec((1, 1, H), lambda b, l: (b, 0, 0)),
        scratch_shapes=[pltpu.VMEM((S, H), jnp.float32),               # activation x
                        pltpu.VMEM((S, H), jnp.float32)],              # per-head context
        compiler_params=pltpu.CompilerParams(
            dimension_semantics=("parallel", "arbitrary"),             # B parallel, L carry
            vmem_limit_bytes=32 * 1024 * 1024),                        # safe on v5e/v6e/v7x
    )(emb, mask_bias,
      prep["emb_ln_g"], prep["emb_ln_b"],
      prep["wqkv"], prep["bqkv"], prep["wo"], prep["bo"],
      prep["ln1_g"], prep["ln1_b"], prep["wi"], prep["bi"],
      prep["wo2"], prep["bo2"], prep["ln2_g"], prep["ln2_b"])

    # Pooler + classifier on all B CLS rows at once (hoisted out of the per-B grid).
    logits = pl.pallas_call(
        _pool_cls_kernel,
        out_shape=jax.ShapeDtypeStruct((B, Ncls), jnp.float32),
    )(cls_hidden.reshape(B, H), prep["pool_w"], prep["pool_b"],
      prep["cls_w"], prep["cls_b"])
    return logits


# --------------------------- Main ---------------------------------------------

if __name__ == "__main__":
    cfg = dict(vocab=128, hidden=32, layers=2, heads=2, intermediate=64,
               max_pos=16, num_classes=3)

    root = jax.random.PRNGKey(0)
    k_param, k_ids = jax.random.split(root)
    params = init_params(k_param, cfg)
    prep = prepare_params(params, cfg)          # one-time stacking / bf16 cast

    B, S = 2, 8
    input_ids = jax.random.randint(k_ids, (B, S), 0, cfg["vocab"], dtype=jnp.int32)
    attention_mask = jnp.ones((B, S), dtype=jnp.int32).at[1, 6:].set(0)  # pad last 2 of row 1

    logits = bert_classifier_forward(prep, input_ids, attention_mask, cfg)
    jax.block_until_ready(logits)
    assert logits.shape == (B, cfg["num_classes"])
    assert bool(jnp.all(jnp.isfinite(logits)))
    print("KERNEL_OK")
</pallas_src>

<mosaic_0001>
module attributes {stable_mosaic.version = 11 : i64} {
  func.func @_bert_layer_kernel(%arg0: i32, %arg1: i32, %arg2: memref<1x8x32xf32, #tpu.memory_space<vmem>>, %arg3: memref<1x1x8xf32, #tpu.memory_space<vmem>>, %arg4: memref<1x32xf32, #tpu.memory_space<vmem>>, %arg5: memref<1x32xf32, #tpu.memory_space<vmem>>, %arg6: memref<1x32x96xbf16, #tpu.memory_space<vmem>>, %arg7: memref<1x1x96xf32, #tpu.memory_space<vmem>>, %arg8: memref<1x32x32xbf16, #tpu.memory_space<vmem>>, %arg9: memref<1x1x32xf32, #tpu.memory_space<vmem>>, %arg10: memref<1x1x32xf32, #tpu.memory_space<vmem>>, %arg11: memref<1x1x32xf32, #tpu.memory_space<vmem>>, %arg12: memref<1x32x64xbf16, #tpu.memory_space<vmem>>, %arg13: memref<1x1x64xf32, #tpu.memory_space<vmem>>, %arg14: memref<1x64x32xbf16, #tpu.memory_space<vmem>>, %arg15: memref<1x1x32xf32, #tpu.memory_space<vmem>>, %arg16: memref<1x1x32xf32, #tpu.memory_space<vmem>>, %arg17: memref<1x1x32xf32, #tpu.memory_space<vmem>>, %arg18: memref<1x1x32xf32, #tpu.memory_space<vmem>>, %arg19: memref<8x32xf32, #tpu.memory_space<vmem>>, %arg20: memref<8x32xf32, #tpu.memory_space<vmem>>) attributes {dimension_semantics = [#tpu.dimension_semantics<parallel>, #tpu.dimension_semantics<arbitrary>], iteration_bounds = array<i64: 2, 2>, scalar_prefetch = 0 : i64, scratch_operands = 2 : i64, tpu.core_type = #tpu.core_type<tc>, window_params = [{transform_indices = @transform_0, window_bounds = array<i64: 1, 8, 32>}, {transform_indices = @transform_1, window_bounds = array<i64: 1, 1, 8>}, {pipeline_mode = #tpu.pipeline_mode<synchronous>, transform_indices = @transform_2, window_bounds = array<i64: 1, 32>}, {pipeline_mode = #tpu.pipeline_mode<synchronous>, transform_indices = @transform_3, window_bounds = array<i64: 1, 32>}, {transform_indices = @transform_4, window_bounds = array<i64: 1, 32, 96>}, {transform_indices = @transform_5, window_bounds = array<i64: 1, 1, 96>}, {transform_indices = @transform_6, window_bounds = array<i64: 1, 32, 32>}, {transform_indices = @transform_7, window_bounds = array<i64: 1, 1, 32>}, {transform_indices = @transform_8, window_bounds = array<i64: 1, 1, 32>}, {transform_indices = @transform_9, window_bounds = array<i64: 1, 1, 32>}, {transform_indices = @transform_10, window_bounds = array<i64: 1, 32, 64>}, {transform_indices = @transform_11, window_bounds = array<i64: 1, 1, 64>}, {transform_indices = @transform_12, window_bounds = array<i64: 1, 64, 32>}, {transform_indices = @transform_13, window_bounds = array<i64: 1, 1, 32>}, {transform_indices = @transform_14, window_bounds = array<i64: 1, 1, 32>}, {transform_indices = @transform_15, window_bounds = array<i64: 1, 1, 32>}, {transform_indices = @transform_16, window_bounds = array<i64: 1, 1, 32>}]} {
    %c0_i32 = arith.constant 0 : i32
    %0 = arith.cmpi eq, %arg1, %c0_i32 : i32
    %1 = arith.extui %0 : i1 to i32
    %c0_i32_0 = arith.constant 0 : i32
    %2 = arith.cmpi ne, %1, %c0_i32_0 : i32
    scf.if %2 {
      %c0_76 = arith.constant 0 : index
      %c0_77 = arith.constant 0 : index
      %c0_78 = arith.constant 0 : index
      %158 = vector.load %arg2[%c0_76, %c0_77, %c0_78] : memref<1x8x32xf32, #tpu.memory_space<vmem>>, vector<1x8x32xf32>
      %159 = vector.shape_cast %158 : vector<1x8x32xf32> to vector<8x32xf32>
      %c0_79 = arith.constant 0 : index
      %c0_80 = arith.constant 0 : index
      %160 = vector.load %arg4[%c0_79, %c0_80] : memref<1x32xf32, #tpu.memory_space<vmem>>, vector<1x32xf32>
      %c0_81 = arith.constant 0 : index
      %c0_82 = arith.constant 0 : index
      %161 = vector.load %arg5[%c0_81, %c0_82] : memref<1x32xf32, #tpu.memory_space<vmem>>, vector<1x32xf32>
      %cst_83 = arith.constant dense<0.000000e+00> : vector<8xf32>
      %162 = vector.multi_reduction <add>, %159, %cst_83 [1] : vector<8x32xf32> to vector<8xf32>
      %163 = vector.shape_cast %162 : vector<8xf32> to vector<8x1xf32>
      %cst_84 = arith.constant 3.200000e+01 : f32
      %164 = vector.broadcast %cst_84 : f32 to vector<8x1xf32>
      %165 = arith.divf %163, %164 : vector<8x1xf32>
      %166 = vector.broadcast %165 : vector<8x1xf32> to vector<8x32xf32>
      %167 = arith.subf %159, %166 : vector<8x32xf32>
      %168 = arith.mulf %167, %167 : vector<8x32xf32>
      %cst_85 = arith.constant dense<0.000000e+00> : vector<8xf32>
      %169 = vector.multi_reduction <add>, %168, %cst_85 [1] : vector<8x32xf32> to vector<8xf32>
      %170 = vector.shape_cast %169 : vector<8xf32> to vector<8x1xf32>
      %cst_86 = arith.constant 3.200000e+01 : f32
      %171 = vector.broadcast %cst_86 : f32 to vector<8x1xf32>
      %172 = arith.divf %170, %171 : vector<8x1xf32>
      %173 = vector.broadcast %165 : vector<8x1xf32> to vector<8x32xf32>
      %174 = arith.subf %159, %173 : vector<8x32xf32>
      %cst_87 = arith.constant 9.99999996E-13 : f32
      %175 = vector.broadcast %cst_87 : f32 to vector<8x1xf32>
      %176 = arith.addf %172, %175 : vector<8x1xf32>
      %177 = math.rsqrt %176 : vector<8x1xf32>
      %178 = vector.broadcast %177 : vector<8x1xf32> to vector<8x32xf32>
      %179 = arith.mulf %174, %178 : vector<8x32xf32>
      %180 = vector.broadcast %160 : vector<1x32xf32> to vector<8x32xf32>
      %181 = arith.mulf %179, %180 : vector<8x32xf32>
      %182 = vector.broadcast %161 : vector<1x32xf32> to vector<8x32xf32>
      %183 = arith.addf %181, %182 : vector<8x32xf32>
      %c0_88 = arith.constant 0 : index
      %c0_89 = arith.constant 0 : index
      %184 = vector.load %arg19[%c0_88, %c0_89] : memref<8x32xf32, #tpu.memory_space<vmem>>, vector<8x32xf32>
      tpu.vector_store %arg19[%c0_88, %c0_89], %183 {strides = array<i32>} : memref<8x32xf32, #tpu.memory_space<vmem>>, vector<8x32xf32>,
    } else {
    }
    %c0 = arith.constant 0 : index
    %c0_1 = arith.constant 0 : index
    %3 = vector.load %arg19[%c0, %c0_1] : memref<8x32xf32, #tpu.memory_space<vmem>>, vector<8x32xf32>
    %c0_2 = arith.constant 0 : index
    %c0_3 = arith.constant 0 : index
    %c0_4 = arith.constant 0 : index
    %4 = vector.load %arg3[%c0_2, %c0_3, %c0_4] : memref<1x1x8xf32, #tpu.memory_space<vmem>>, vector<1x1x8xf32>
    %5 = vector.shape_cast %4 : vector<1x1x8xf32> to vector<1x8xf32>
    %6 = arith.truncf %3 : vector<8x32xf32> to vector<8x32xbf16>
    %c0_5 = arith.constant 0 : index
    %c0_6 = arith.constant 0 : index
    %c0_7 = arith.constant 0 : index
    %7 = vector.load %arg6[%c0_5, %c0_6, %c0_7] : memref<1x32x96xbf16, #tpu.memory_space<vmem>>, vector<1x32x96xbf16>
    %8 = vector.shape_cast %7 : vector<1x32x96xbf16> to vector<32x96xbf16>
    %cst = arith.constant dense<0.000000e+00> : vector<8x96xf32>
    %9 = tpu.matmul %6, %8, %cst {dimension_numbers = #tpu.dot_dimension_numbers<[1], [0], [0], [1], [0, 0, 1, 1], [], []>} : vector<8x32xbf16>, vector<32x96xbf16>, vector<8x96xf32> -> vector<8x96xf32>
    %c0_8 = arith.constant 0 : index
    %c0_9 = arith.constant 0 : index
    %c0_10 = arith.constant 0 : index
    %10 = vector.load %arg7[%c0_8, %c0_9, %c0_10] : memref<1x1x96xf32, #tpu.memory_space<vmem>>, vector<1x1x96xf32>
    %11 = vector.shape_cast %10 : vector<1x1x96xf32> to vector<1x96xf32>
    %12 = vector.broadcast %11 : vector<1x96xf32> to vector<8x96xf32>
    %13 = arith.addf %9, %12 : vector<8x96xf32>
    %14 = vector.extract_strided_slice %13 {offsets = [0, 0], sizes = [8, 16], strides = [1, 1]} : vector<8x96xf32> to vector<8x16xf32>
    %15 = arith.truncf %14 : vector<8x16xf32> to vector<8x16xbf16>
    %16 = vector.extract_strided_slice %13 {offsets = [0, 32], sizes = [8, 16], strides = [1, 1]} : vector<8x96xf32> to vector<8x16xf32>
    %17 = arith.truncf %16 : vector<8x16xf32> to vector<8x16xbf16>
    %18 = vector.extract_strided_slice %13 {offsets = [0, 64], sizes = [8, 16], strides = [1, 1]} : vector<8x96xf32> to vector<8x16xf32>
    %19 = arith.truncf %18 : vector<8x16xf32> to vector<8x16xbf16>
    %cst_11 = arith.constant dense<0.000000e+00> : vector<8x8xf32>
    %20 = tpu.matmul %15, %17, %cst_11 {dimension_numbers = #tpu.dot_dimension_numbers<[1], [1], [0], [0], [0, 0, 1, 0], [], []>} : vector<8x16xbf16>, vector<8x16xbf16>, vector<8x8xf32> -> vector<8x8xf32>
    %cst_12 = arith.constant 2.500000e-01 : f32
    %21 = vector.broadcast %cst_12 : f32 to vector<8x8xf32>
    %22 = arith.mulf %20, %21 : vector<8x8xf32>
    %23 = vector.broadcast %5 : vector<1x8xf32> to vector<8x8xf32>
    %24 = arith.addf %22, %23 : vector<8x8xf32>
    %cst_13 = arith.constant dense<0xFF800000> : vector<8xf32>
    %25 = vector.multi_reduction <maximumf>, %24, %cst_13 [1] : vector<8x8xf32> to vector<8xf32>
    %26 = vector.shape_cast %25 : vector<8xf32> to vector<8x1xf32>
    %27 = vector.broadcast %26 : vector<8x1xf32> to vector<8x8xf32>
    %28 = arith.subf %24, %27 : vector<8x8xf32>
    %29 = math.exp %28 : vector<8x8xf32>
    %cst_14 = arith.constant dense<0.000000e+00> : vector<8xf32>
    %30 = vector.multi_reduction <add>, %29, %cst_14 [1] : vector<8x8xf32> to vector<8xf32>
    %31 = vector.shape_cast %30 : vector<8xf32> to vector<8x1xf32>
    %32 = tpu.reciprocal %31 {approx = true} : vector<8x1xf32> -> vector<8x1xf32>
    %33 = vector.broadcast %32 : vector<8x1xf32> to vector<8x8xf32>
    %34 = arith.mulf %29, %33 : vector<8x8xf32>
    %35 = arith.truncf %34 : vector<8x8xf32> to vector<8x8xbf16>
    %cst_15 = arith.constant dense<0.000000e+00> : vector<8x16xf32>
    %36 = tpu.matmul %35, %19, %cst_15 {dimension_numbers = #tpu.dot_dimension_numbers<[1], [0], [0], [1], [0, 0, 1, 1], [], []>} : vector<8x8xbf16>, vector<8x16xbf16>, vector<8x16xf32> -> vector<8x16xf32>
    %c0_16 = arith.constant 0 : index
    %c0_17 = arith.constant 0 : index
    %37 = vector.load %arg20[%c0_16, %c0_17] : memref<8x32xf32, #tpu.memory_space<vmem>>, vector<8x16xf32>
    tpu.vector_store %arg20[%c0_16, %c0_17], %36 {strides = array<i32>} : memref<8x32xf32, #tpu.memory_space<vmem>>, vector<8x16xf32>,
    %38 = vector.extract_strided_slice %13 {offsets = [0, 16], sizes = [8, 16], strides = [1, 1]} : vector<8x96xf32> to vector<8x16xf32>
    %39 = arith.truncf %38 : vector<8x16xf32> to vector<8x16xbf16>
    %40 = vector.extract_strided_slice %13 {offsets = [0, 48], sizes = [8, 16], strides = [1, 1]} : vector<8x96xf32> to vector<8x16xf32>
    %41 = arith.truncf %40 : vector<8x16xf32> to vector<8x16xbf16>
    %42 = vector.extract_strided_slice %13 {offsets = [0, 80], sizes = [8, 16], strides = [1, 1]} : vector<8x96xf32> to vector<8x16xf32>
    %43 = arith.truncf %42 : vector<8x16xf32> to vector<8x16xbf16>
    %cst_18 = arith.constant dense<0.000000e+00> : vector<8x8xf32>
    %44 = tpu.matmul %39, %41, %cst_18 {dimension_numbers = #tpu.dot_dimension_numbers<[1], [1], [0], [0], [0, 0, 1, 0], [], []>} : vector<8x16xbf16>, vector<8x16xbf16>, vector<8x8xf32> -> vector<8x8xf32>
    %cst_19 = arith.constant 2.500000e-01 : f32
    %45 = vector.broadcast %cst_19 : f32 to vector<8x8xf32>
    %46 = arith.mulf %44, %45 : vector<8x8xf32>
    %47 = vector.broadcast %5 : vector<1x8xf32> to vector<8x8xf32>
    %48 = arith.addf %46, %47 : vector<8x8xf32>
    %cst_20 = arith.constant dense<0xFF800000> : vector<8xf32>
    %49 = vector.multi_reduction <maximumf>, %48, %cst_20 [1] : vector<8x8xf32> to vector<8xf32>
    %50 = vector.shape_cast %49 : vector<8xf32> to vector<8x1xf32>
    %51 = vector.broadcast %50 : vector<8x1xf32> to vector<8x8xf32>
    %52 = arith.subf %48, %51 : vector<8x8xf32>
    %53 = math.exp %52 : vector<8x8xf32>
    %cst_21 = arith.constant dense<0.000000e+00> : vector<8xf32>
    %54 = vector.multi_reduction <add>, %53, %cst_21 [1] : vector<8x8xf32> to vector<8xf32>
    %55 = vector.shape_cast %54 : vector<8xf32> to vector<8x1xf32>
    %56 = tpu.reciprocal %55 {approx = true} : vector<8x1xf32> -> vector<8x1xf32>
    %57 = vector.broadcast %56 : vector<8x1xf32> to vector<8x8xf32>
    %58 = arith.mulf %53, %57 : vector<8x8xf32>
    %59 = arith.truncf %58 : vector<8x8xf32> to vector<8x8xbf16>
    %cst_22 = arith.constant dense<0.000000e+00> : vector<8x16xf32>
    %60 = tpu.matmul %59, %43, %cst_22 {dimension_numbers = #tpu.dot_dimension_numbers<[1], [0], [0], [1], [0, 0, 1, 1], [], []>} : vector<8x8xbf16>, vector<8x16xbf16>, vector<8x16xf32> -> vector<8x16xf32>
    %c0_23 = arith.constant 0 : index
    %c16 = arith.constant 16 : index
    %61 = vector.load %arg20[%c0_23, %c16] : memref<8x32xf32, #tpu.memory_space<vmem>>, vector<8x16xf32>
    tpu.vector_store %arg20[%c0_23, %c16], %60 {strides = array<i32>} : memref<8x32xf32, #tpu.memory_space<vmem>>, vector<8x16xf32>,
    %c0_24 = arith.constant 0 : index
    %c0_25 = arith.constant 0 : index
    %62 = vector.load %arg20[%c0_24, %c0_25] : memref<8x32xf32, #tpu.memory_space<vmem>>, vector<8x32xf32>
    %63 = arith.truncf %62 : vector<8x32xf32> to vector<8x32xbf16>
    %c0_26 = arith.constant 0 : index
    %c0_27 = arith.constant 0 : index
    %c0_28 = arith.constant 0 : index
    %64 = vector.load %arg8[%c0_26, %c0_27, %c0_28] : memref<1x32x32xbf16, #tpu.memory_space<vmem>>, vector<1x32x32xbf16>
    %65 = vector.shape_cast %64 : vector<1x32x32xbf16> to vector<32x32xbf16>
    %cst_29 = arith.constant dense<0.000000e+00> : vector<8x32xf32>
    %66 = tpu.matmul %63, %65, %cst_29 {dimension_numbers = #tpu.dot_dimension_numbers<[1], [0], [0], [1], [0, 0, 1, 1], [], []>} : vector<8x32xbf16>, vector<32x32xbf16>, vector<8x32xf32> -> vector<8x32xf32>
    %c0_30 = arith.constant 0 : index
    %c0_31 = arith.constant 0 : index
    %c0_32 = arith.constant 0 : index
    %67 = vector.load %arg9[%c0_30, %c0_31, %c0_32] : memref<1x1x32xf32, #tpu.memory_space<vmem>>, vector<1x1x32xf32>
    %68 = vector.shape_cast %67 : vector<1x1x32xf32> to vector<1x32xf32>
    %69 = vector.broadcast %68 : vector<1x32xf32> to vector<8x32xf32>
    %70 = arith.addf %66, %69 : vector<8x32xf32>
    %71 = arith.addf %70, %3 : vector<8x32xf32>
    %c0_33 = arith.constant 0 : index
    %c0_34 = arith.constant 0 : index
    %c0_35 = arith.constant 0 : index
    %72 = vector.load %arg10[%c0_33, %c0_34, %c0_35] : memref<1x1x32xf32, #tpu.memory_space<vmem>>, vector<1x1x32xf32>
    %73 = vector.shape_cast %72 : vector<1x1x32xf32> to vector<1x32xf32>
    %c0_36 = arith.constant 0 : index
    %c0_37 = arith.constant 0 : index
    %c0_38 = arith.constant 0 : index
    %74 = vector.load %arg11[%c0_36, %c0_37, %c0_38] : memref<1x1x32xf32, #tpu.memory_space<vmem>>, vector<1x1x32xf32>
    %75 = vector.shape_cast %74 : vector<1x1x32xf32> to vector<1x32xf32>
    %cst_39 = arith.constant dense<0.000000e+00> : vector<8xf32>
    %76 = vector.multi_reduction <add>, %71, %cst_39 [1] : vector<8x32xf32> to vector<8xf32>
    %77 = vector.shape_cast %76 : vector<8xf32> to vector<8x1xf32>
    %cst_40 = arith.constant 3.200000e+01 : f32
    %78 = vector.broadcast %cst_40 : f32 to vector<8x1xf32>
    %79 = arith.divf %77, %78 : vector<8x1xf32>
    %80 = vector.broadcast %79 : vector<8x1xf32> to vector<8x32xf32>
    %81 = arith.subf %71, %80 : vector<8x32xf32>
    %82 = arith.mulf %81, %81 : vector<8x32xf32>
    %cst_41 = arith.constant dense<0.000000e+00> : vector<8xf32>
    %83 = vector.multi_reduction <add>, %82, %cst_41 [1] : vector<8x32xf32> to vector<8xf32>
    %84 = vector.shape_cast %83 : vector<8xf32> to vector<8x1xf32>
    %cst_42 = arith.constant 3.200000e+01 : f32
    %85 = vector.broadcast %cst_42 : f32 to vector<8x1xf32>
    %86 = arith.divf %84, %85 : vector<8x1xf32>
    %87 = vector.broadcast %79 : vector<8x1xf32> to vector<8x32xf32>
    %88 = arith.subf %71, %87 : vector<8x32xf32>
    %cst_43 = arith.constant 9.99999996E-13 : f32
    %89 = vector.broadcast %cst_43 : f32 to vector<8x1xf32>
    %90 = arith.addf %86, %89 : vector<8x1xf32>
    %91 = math.rsqrt %90 : vector<8x1xf32>
    %92 = vector.broadcast %91 : vector<8x1xf32> to vector<8x32xf32>
    %93 = arith.mulf %88, %92 : vector<8x32xf32>
    %94 = vector.broadcast %73 : vector<1x32xf32> to vector<8x32xf32>
    %95 = arith.mulf %93, %94 : vector<8x32xf32>
    %96 = vector.broadcast %75 : vector<1x32xf32> to vector<8x32xf32>
    %97 = arith.addf %95, %96 : vector<8x32xf32>
    %98 = arith.truncf %97 : vector<8x32xf32> to vector<8x32xbf16>
    %c0_44 = arith.constant 0 : index
    %c0_45 = arith.constant 0 : index
    %c0_46 = arith.constant 0 : index
    %99 = vector.load %arg12[%c0_44, %c0_45, %c0_46] : memref<1x32x64xbf16, #tpu.memory_space<vmem>>, vector<1x32x64xbf16>
    %100 = vector.shape_cast %99 : vector<1x32x64xbf16> to vector<32x64xbf16>
    %cst_47 = arith.constant dense<0.000000e+00> : vector<8x64xf32>
    %101 = tpu.matmul %98, %100, %cst_47 {dimension_numbers = #tpu.dot_dimension_numbers<[1], [0], [0], [1], [0, 0, 1, 1], [], []>} : vector<8x32xbf16>, vector<32x64xbf16>, vector<8x64xf32> -> vector<8x64xf32>
    %c0_48 = arith.constant 0 : index
    %c0_49 = arith.constant 0 : index
    %c0_50 = arith.constant 0 : index
    %102 = vector.load %arg13[%c0_48, %c0_49, %c0_50] : memref<1x1x64xf32, #tpu.memory_space<vmem>>, vector<1x1x64xf32>
    %103 = vector.shape_cast %102 : vector<1x1x64xf32> to vector<1x64xf32>
    %104 = vector.broadcast %103 : vector<1x64xf32> to vector<8x64xf32>
    %105 = arith.addf %101, %104 : vector<8x64xf32>
    %cst_51 = arith.constant 5.000000e-01 : f32
    %106 = vector.broadcast %cst_51 : f32 to vector<8x64xf32>
    %107 = arith.mulf %106, %105 : vector<8x64xf32>
    %cst_52 = arith.constant 4.471500e-02 : f32
    %108 = vector.broadcast %cst_52 : f32 to vector<8x64xf32>
    %109 = arith.mulf %108, %105 : vector<8x64xf32>
    %110 = arith.mulf %109, %105 : vector<8x64xf32>
    %111 = arith.mulf %110, %105 : vector<8x64xf32>
    %112 = arith.addf %105, %111 : vector<8x64xf32>
    %cst_53 = arith.constant 0.797884583 : f32
    %113 = vector.broadcast %cst_53 : f32 to vector<8x64xf32>
    %114 = arith.mulf %113, %112 : vector<8x64xf32>
    %115 = math.tanh %114 : vector<8x64xf32>
    %cst_54 = arith.constant 1.000000e+00 : f32
    %116 = vector.broadcast %cst_54 : f32 to vector<8x64xf32>
    %117 = arith.addf %116, %115 : vector<8x64xf32>
    %118 = arith.mulf %107, %117 : vector<8x64xf32>
    %119 = arith.truncf %118 : vector<8x64xf32> to vector<8x64xbf16>
    %c0_55 = arith.constant 0 : index
    %c0_56 = arith.constant 0 : index
    %c0_57 = arith.constant 0 : index
    %120 = vector.load %arg14[%c0_55, %c0_56, %c0_57] : memref<1x64x32xbf16, #tpu.memory_space<vmem>>, vector<1x64x32xbf16>
    %121 = vector.shape_cast %120 : vector<1x64x32xbf16> to vector<64x32xbf16>
    %cst_58 = arith.constant dense<0.000000e+00> : vector<8x32xf32>
    %122 = tpu.matmul %119, %121, %cst_58 {dimension_numbers = #tpu.dot_dimension_numbers<[1], [0], [0], [1], [0, 0, 1, 1], [], []>} : vector<8x64xbf16>, vector<64x32xbf16>, vector<8x32xf32> -> vector<8x32xf32>
    %c0_59 = arith.constant 0 : index
    %c0_60 = arith.constant 0 : index
    %c0_61 = arith.constant 0 : index
    %123 = vector.load %arg15[%c0_59, %c0_60, %c0_61] : memref<1x1x32xf32, #tpu.memory_space<vmem>>, vector<1x1x32xf32>
    %124 = vector.shape_cast %123 : vector<1x1x32xf32> to vector<1x32xf32>
    %125 = vector.broadcast %124 : vector<1x32xf32> to vector<8x32xf32>
    %126 = arith.addf %122, %125 : vector<8x32xf32>
    %127 = arith.addf %126, %97 : vector<8x32xf32>
    %c0_62 = arith.constant 0 : index
    %c0_63 = arith.constant 0 : index
    %c0_64 = arith.constant 0 : index
    %128 = vector.load %arg16[%c0_62, %c0_63, %c0_64] : memref<1x1x32xf32, #tpu.memory_space<vmem>>, vector<1x1x32xf32>
    %129 = vector.shape_cast %128 : vector<1x1x32xf32> to vector<1x32xf32>
    %c0_65 = arith.constant 0 : index
    %c0_66 = arith.constant 0 : index
    %c0_67 = arith.constant 0 : index
    %130 = vector.load %arg17[%c0_65, %c0_66, %c0_67] : memref<1x1x32xf32, #tpu.memory_space<vmem>>, vector<1x1x32xf32>
    %131 = vector.shape_cast %130 : vector<1x1x32xf32> to vector<1x32xf32>
    %cst_68 = arith.constant dense<0.000000e+00> : vector<8xf32>
    %132 = vector.multi_reduction <add>, %127, %cst_68 [1] : vector<8x32xf32> to vector<8xf32>
    %133 = vector.shape_cast %132 : vector<8xf32> to vector<8x1xf32>
    %cst_69 = arith.constant 3.200000e+01 : f32
    %134 = vector.broadcast %cst_69 : f32 to vector<8x1xf32>
    %135 = arith.divf %133, %134 : vector<8x1xf32>
    %136 = vector.broadcast %135 : vector<8x1xf32> to vector<8x32xf32>
    %137 = arith.subf %127, %136 : vector<8x32xf32>
    %138 = arith.mulf %137, %137 : vector<8x32xf32>
    %cst_70 = arith.constant dense<0.000000e+00> : vector<8xf32>
    %139 = vector.multi_reduction <add>, %138, %cst_70 [1] : vector<8x32xf32> to vector<8xf32>
    %140 = vector.shape_cast %139 : vector<8xf32> to vector<8x1xf32>
    %cst_71 = arith.constant 3.200000e+01 : f32
    %141 = vector.broadcast %cst_71 : f32 to vector<8x1xf32>
    %142 = arith.divf %140, %141 : vector<8x1xf32>
    %143 = vector.broadcast %135 : vector<8x1xf32> to vector<8x32xf32>
    %144 = arith.subf %127, %143 : vector<8x32xf32>
    %cst_72 = arith.constant 9.99999996E-13 : f32
    %145 = vector.broadcast %cst_72 : f32 to vector<8x1xf32>
    %146 = arith.addf %142, %145 : vector<8x1xf32>
    %147 = math.rsqrt %146 : vector<8x1xf32>
    %148 = vector.broadcast %147 : vector<8x1xf32> to vector<8x32xf32>
    %149 = arith.mulf %144, %148 : vector<8x32xf32>
    %150 = vector.broadcast %129 : vector<1x32xf32> to vector<8x32xf32>
    %151 = arith.mulf %149, %150 : vector<8x32xf32>
    %152 = vector.broadcast %131 : vector<1x32xf32> to vector<8x32xf32>
    %153 = arith.addf %151, %152 : vector<8x32xf32>
    %c0_73 = arith.constant 0 : index
    %c0_74 = arith.constant 0 : index
    %154 = vector.load %arg19[%c0_73, %c0_74] : memref<8x32xf32, #tpu.memory_space<vmem>>, vector<8x32xf32>
    tpu.vector_store %arg19[%c0_73, %c0_74], %153 {strides = array<i32>} : memref<8x32xf32, #tpu.memory_space<vmem>>, vector<8x32xf32>,
    %c1_i32 = arith.constant 1 : i32
    %155 = arith.cmpi eq, %arg1, %c1_i32 : i32
    %156 = arith.extui %155 : i1 to i32
    %c0_i32_75 = arith.constant 0 : i32
    %157 = arith.cmpi ne, %156, %c0_i32_75 : i32
    scf.if %157 {
      %158 = vector.extract_strided_slice %153 {offsets = [0, 0], sizes = [1, 32], strides = [1, 1]} : vector<8x32xf32> to vector<1x32xf32>
      %c0_76 = arith.constant 0 : index
      %c0_77 = arith.constant 0 : index
      %c0_78 = arith.constant 0 : index
      %159 = vector.load %arg18[%c0_76, %c0_77, %c0_78] : memref<1x1x32xf32, #tpu.memory_space<vmem>>, vector<1x1x32xf32>
      %160 = vector.shape_cast %159 : vector<1x1x32xf32> to vector<1x32xf32>
      %161 = vector.shape_cast %158 : vector<1x32xf32> to vector<1x1x32xf32>
      tpu.vector_store %arg18[%c0_76, %c0_77, %c0_78], %161 {strides = array<i32>} : memref<1x1x32xf32, #tpu.memory_space<vmem>>, vector<1x1x32xf32>,
    } else {
    }
    return
  }
  func.func @transform_0(%arg0: i32, %arg1: i32) -> (i32, i32, i32) {
    %c0_i32 = arith.constant 0 : i32
    %c0_i32_0 = arith.constant 0 : i32
    %c0_i32_1 = arith.constant 0 : i32
    return %arg0, %c0_i32, %c0_i32_0 : i32, i32, i32
  }
  func.func @transform_1(%arg0: i32, %arg1: i32) -> (i32, i32, i32) {
    %c0_i32 = arith.constant 0 : i32
    %c0_i32_0 = arith.constant 0 : i32
    %c0_i32_1 = arith.constant 0 : i32
    return %arg0, %c0_i32, %c0_i32_0 : i32, i32, i32
  }
  func.func @transform_2(%arg0: i32, %arg1: i32) -> (i32, i32) {
    %c0_i32 = arith.constant 0 : i32
    %c0_i32_0 = arith.constant 0 : i32
    %c0_i32_1 = arith.constant 0 : i32
    return %c0_i32, %c0_i32_0 : i32, i32
  }
  func.func @transform_3(%arg0: i32, %arg1: i32) -> (i32, i32) {
    %c0_i32 = arith.constant 0 : i32
    %c0_i32_0 = arith.constant 0 : i32
    %c0_i32_1 = arith.constant 0 : i32
    return %c0_i32, %c0_i32_0 : i32, i32
  }
  func.func @transform_4(%arg0: i32, %arg1: i32) -> (i32, i32, i32) {
    %c0_i32 = arith.constant 0 : i32
    %c0_i32_0 = arith.constant 0 : i32
    %c0_i32_1 = arith.constant 0 : i32
    return %arg1, %c0_i32, %c0_i32_0 : i32, i32, i32
  }
  func.func @transform_5(%arg0: i32, %arg1: i32) -> (i32, i32, i32) {
    %c0_i32 = arith.constant 0 : i32
    %c0_i32_0 = arith.constant 0 : i32
    %c0_i32_1 = arith.constant 0 : i32
    return %arg1, %c0_i32, %c0_i32_0 : i32, i32, i32
  }
  func.func @transform_6(%arg0: i32, %arg1: i32) -> (i32, i32, i32) {
    %c0_i32 = arith.constant 0 : i32
    %c0_i32_0 = arith.constant 0 : i32
    %c0_i32_1 = arith.constant 0 : i32
    return %arg1, %c0_i32, %c0_i32_0 : i32, i32, i32
  }
  func.func @transform_7(%arg0: i32, %arg1: i32) -> (i32, i32, i32) {
    %c0_i32 = arith.constant 0 : i32
    %c0_i32_0 = arith.constant 0 : i32
    %c0_i32_1 = arith.constant 0 : i32
    return %arg1, %c0_i32, %c0_i32_0 : i32, i32, i32
  }
  func.func @transform_8(%arg0: i32, %arg1: i32) -> (i32, i32, i32) {
    %c0_i32 = arith.constant 0 : i32
    %c0_i32_0 = arith.constant 0 : i32
    %c0_i32_1 = arith.constant 0 : i32
    return %arg1, %c0_i32, %c0_i32_0 : i32, i32, i32
  }
  func.func @transform_9(%arg0: i32, %arg1: i32) -> (i32, i32, i32) {
    %c0_i32 = arith.constant 0 : i32
    %c0_i32_0 = arith.constant 0 : i32
    %c0_i32_1 = arith.constant 0 : i32
    return %arg1, %c0_i32, %c0_i32_0 : i32, i32, i32
  }
  func.func @transform_10(%arg0: i32, %arg1: i32) -> (i32, i32, i32) {
    %c0_i32 = arith.constant 0 : i32
    %c0_i32_0 = arith.constant 0 : i32
    %c0_i32_1 = arith.constant 0 : i32
    return %arg1, %c0_i32, %c0_i32_0 : i32, i32, i32
  }
  func.func @transform_11(%arg0: i32, %arg1: i32) -> (i32, i32, i32) {
    %c0_i32 = arith.constant 0 : i32
    %c0_i32_0 = arith.constant 0 : i32
    %c0_i32_1 = arith.constant 0 : i32
    return %arg1, %c0_i32, %c0_i32_0 : i32, i32, i32
  }
  func.func @transform_12(%arg0: i32, %arg1: i32) -> (i32, i32, i32) {
    %c0_i32 = arith.constant 0 : i32
    %c0_i32_0 = arith.constant 0 : i32
    %c0_i32_1 = arith.constant 0 : i32
    return %arg1, %c0_i32, %c0_i32_0 : i32, i32, i32
  }
  func.func @transform_13(%arg0: i32, %arg1: i32) -> (i32, i32, i32) {
    %c0_i32 = arith.constant 0 : i32
    %c0_i32_0 = arith.constant 0 : i32
    %c0_i32_1 = arith.constant 0 : i32
    return %arg1, %c0_i32, %c0_i32_0 : i32, i32, i32
  }
  func.func @transform_14(%arg0: i32, %arg1: i32) -> (i32, i32, i32) {
    %c0_i32 = arith.constant 0 : i32
    %c0_i32_0 = arith.constant 0 : i32
    %c0_i32_1 = arith.constant 0 : i32
    return %arg1, %c0_i32, %c0_i32_0 : i32, i32, i32
  }
  func.func @transform_15(%arg0: i32, %arg1: i32) -> (i32, i32, i32) {
    %c0_i32 = arith.constant 0 : i32
    %c0_i32_0 = arith.constant 0 : i32
    %c0_i32_1 = arith.constant 0 : i32
    return %arg1, %c0_i32, %c0_i32_0 : i32, i32, i32
  }
  func.func @transform_16(%arg0: i32, %arg1: i32) -> (i32, i32, i32) {
    %c0_i32 = arith.constant 0 : i32
    %c0_i32_0 = arith.constant 0 : i32
    %c0_i32_1 = arith.constant 0 : i32
    return %arg0, %c0_i32, %c0_i32_0 : i32, i32, i32
  }
}

</mosaic_0001>

<llo_original>
// kernel: tpu_custom_call.1
$region0: #{tpu_custom_call.1}
  #allocation0 [shape = 'u32[]', space=smem, size = 0x4, offset = 0x4, fixed_abs, tag = 'smem constant byte address 0x4 - core index']
  #allocation1 [shape = 'u32[144,128]{1,0:T(1,128)}', space=vmem, size = 0x12000, scoped, tag = 'internal scratch']
  #allocation2 [shape = 'f32[8,32]{1,0:T(8,128)}', space=vmem, size = 0x1000, scoped, tag = 'scratch operand']
  #allocation3 [shape = 'f32[8,32]{1,0:T(8,128)}', space=vmem, size = 0x1000, scoped, tag = 'scratch operand']
  %s0 = inlined_call_operand.hbm [shape: f32[2,8,32], index: 0, kind: input, shape index: {}]
  %s1 = inlined_call_operand.vmem [shape: f32[2,1,8], index: 1, kind: input, shape index: {}]
  %s2 = inlined_call_operand.vmem [shape: f32[1,32], index: 2, kind: input, shape index: {}]
  %s3 = inlined_call_operand.hbm [shape: f32[1,32], index: 3, kind: input, shape index: {}]
  %s4 = inlined_call_operand.vmem [shape: bf16[2,32,96], index: 4, kind: input, shape index: {}]
  %s5 = inlined_call_operand.vmem [shape: f32[2,1,96], index: 5, kind: input, shape index: {}]
  %s6 = inlined_call_operand.vmem [shape: bf16[2,32,32], index: 6, kind: input, shape index: {}]
  %s7 = inlined_call_operand.vmem [shape: f32[2,1,32], index: 7, kind: input, shape index: {}]
  %s8 = inlined_call_operand.vmem [shape: f32[2,1,32], index: 8, kind: input, shape index: {}]
  %s9 = inlined_call_operand.vmem [shape: f32[2,1,32], index: 9, kind: input, shape index: {}]
  %s10 = inlined_call_operand.vmem [shape: bf16[2,32,64], index: 10, kind: input, shape index: {}]
  %s11 = inlined_call_operand.vmem [shape: f32[2,1,64], index: 11, kind: input, shape index: {}]
  %s12 = inlined_call_operand.vmem [shape: bf16[2,64,32], index: 12, kind: input, shape index: {}]
  %s13 = inlined_call_operand.vmem [shape: f32[2,1,32], index: 13, kind: input, shape index: {}]
  %s14 = inlined_call_operand.vmem [shape: f32[2,1,32], index: 14, kind: input, shape index: {}]
  %s15 = inlined_call_operand.vmem [shape: f32[2,1,32], index: 15, kind: input, shape index: {}]
  %s16 = inlined_call_operand.hbm [shape: f32[2,1,32], index: 16, kind: output, shape index: {}]
  %s17 = sld [smem:[#allocation0]]
  $region113: #{tpu_custom_call.1} parent=0
    _
  %s19 = ssub.s32 1, %s17
  %s20 = scalar_select 0, %s19, %s17
  $region1: #{tpu_custom_call.1} parent=0
    #allocation4 [shape = 'u8[8192]{0}', space=vmem, size = 0x2000, scoped, tag = 'input window, operand 0']
    #allocation5 [shape = 's32[2]{0}', space=sflag, size = 0x8, scoped, tag = 'scoped memory for tpu_custom_call.1']
    #allocation6 [shape = 's32[2]{0}', space=sflag, size = 0x8, scoped, tag = 'scoped memory for tpu_custom_call.1']
    #allocation7 [shape = 'u8[512]{0}', space=vmem, size = 0x400, scoped, tag = 'input window, operand 3, single buffered']
    #allocation8 [shape = 's32[1]{0}', space=sflag, size = 0x4, scoped, tag = 'scoped memory for tpu_custom_call.1']
    #allocation9 [shape = 'u8[1024]{0}', space=vmem, size = 0x400, scoped, tag = 'output window, operand 0']
    %21 = vsyncpa [#allocation5], 0
    %s22 = scalar_lea.sflag [#allocation5], 1
    %23 = vsyncpa %s22, 0
    %24 = vsyncpa [#allocation8], 0
    %25 = vsyncpa [#allocation6], 0
    %s26 = scalar_lea.sflag [#allocation6], 1
    %27 = vsyncpa %s26, 0
    loop: start=0, step=1, limit=6
    $region2: #{tpu_custom_call.1} parent=1 // loop_pre_header
      _
    $region3: #{tpu_custom_call.1} parent=1 // loop_header
      %s29 = sphi 0, %s33
      %p30 = scmp.ge.s32.totalorder %s29, 6
      %s36 = sphi 0, %s48
      %s37 = sphi 0, %s44
      %s38 = sphi 0, %s36
      %s39 = sphi 0, %s37
      %s40 = sphi 0, %s38
      %s41 = sphi 0, %s39
      %s51 = sphi 0, %s53
      %s54 = sphi 0, %s51
      %s55 = sphi 0, %s54
      %s71 = sphi 0, %s55
      %s77 = sphi 0, %s79
      %s80 = sphi 0, %s77
      %s81 = sphi 0, %s80
      %s97 = sphi 0, %s81
      %s101 = sphi 0, %s101
      %s103 = sphi 0, %s101
      %s104 = sphi 0, %s103
      %s118 = sphi 0, %s104
      %s122 = sphi 0, %s122
      %s124 = sphi 0, %s122
      %s125 = sphi 0, %s124
      %s139 = sphi 0, %s125
      %s145 = sphi 0, %s147
      %s148 = sphi 0, %s145
      %s149 = sphi 0, %s148
      %s165 = sphi 0, %s149
      %s171 = sphi 0, %s173
      %s174 = sphi 0, %s171
      %s175 = sphi 0, %s174
      %s191 = sphi 0, %s175
      %s197 = sphi 0, %s199
      %s200 = sphi 0, %s197
      %s201 = sphi 0, %s200
      %s217 = sphi 0, %s201
      %s223 = sphi 0, %s225
      %s226 = sphi 0, %s223
      %s227 = sphi 0, %s226
      %s243 = sphi 0, %s227
      %s249 = sphi 0, %s251
      %s252 = sphi 0, %s249
      %s253 = sphi 0, %s252
      %s269 = sphi 0, %s253
      %s275 = sphi 0, %s277
      %s278 = sphi 0, %s275
      %s279 = sphi 0, %s278
      %s295 = sphi 0, %s279
      %s301 = sphi 0, %s303
      %s304 = sphi 0, %s301
      %s305 = sphi 0, %s304
      %s321 = sphi 0, %s305
      %s327 = sphi 0, %s329
      %s330 = sphi 0, %s327
      %s331 = sphi 0, %s330
      %s347 = sphi 0, %s331
      %s353 = sphi 0, %s355
      %s356 = sphi 0, %s353
      %s357 = sphi 0, %s356
      %s373 = sphi 0, %s357
      %s379 = sphi 0, %s381
      %s382 = sphi 0, %s379
      %s383 = sphi 0, %s382
      %s399 = sphi 0, %s383
      %s405 = sphi 0, %s407
      %s408 = sphi 0, %s405
      %s409 = sphi 0, %s408
      %s425 = sphi 0, %s409
      %s431 = sphi 0, %s433
      %s434 = sphi 0, %s431
      %s435 = sphi 0, %s434
      %s451 = sphi 0, %s435
      %s457 = sphi 0, %s459
      %s460 = sphi 0, %s457
      %s461 = sphi 0, %s460
      %s477 = sphi 0, %s461
    $region4: #{tpu_custom_call.1} parent=1 // loop_header_branch
      %32 = sbr.rel (%p30) target = $region8
    $region5: #{tpu_custom_call.1} parent=1 // loop_body
      %s34 = ssub.s32 %s29, 1
      %s35 = ssub.s32 %s29, 2
      %s42 = sadd.s32 1, %s37
      %p43 = scmp.ge.s32.totalorder %s42, 2
      %s44 = scalar_select %p43, 0, %s42
      %s45 = sadd.s32 1, %s36
      %s46 = scalar_select %p43, %s45, %s36
      %p47 = scmp.ge.s32.totalorder %s46, 2
      %s48 = scalar_select %p47, 0, %s46
      %s49 = ssub.s32 %s36, %s48
      %p50 = scmp.eq.s32.totalorder %s49, 0
      %s52 = sadd.s32 %s51, 1
      %s53 = scalar_select %p50, %s51, %s52
      %p56 = pneg %p50
      %p57 = scmp.eq.s32.totalorder %s29, 3
      %p58 = por %p56, %p57
      %p59 = scmp.ne.s32.totalorder %s51, %s54
      %p60 = scmp.eq.s32.totalorder %s29, 0
      %p61 = por %p59, %p60
      %p62 = scmp.ne.s32.totalorder %s51, %s54
      %p63 = scmp.eq.s32.totalorder %s34, 3
      %p64 = por %p62, %p63
      %p65 = scmp.ne.s32.totalorder %s54, %s55
      %p66 = scmp.eq.s32.totalorder %s34, 0
      %p67 = por %p65, %p66
      %p68 = scmp.ne.s32.totalorder %s54, %s55
      %p69 = scmp.eq.s32.totalorder %s35, 3
      %p70 = por %p68, %p69
      %p72 = scmp.ne.s32.totalorder %s55, %s71
      %p73 = scmp.eq.s32.totalorder %s35, 0
      %p74 = por %p72, %p73
      %s75 = ssub.s32 %s36, %s48
      %p76 = scmp.eq.s32.totalorder %s75, 0
      %s78 = sadd.s32 %s77, 1
      %s79 = scalar_select %p76, %s77, %s78
      %p82 = pneg %p76
      %p83 = scmp.eq.s32.totalorder %s29, 3
      %p84 = por %p82, %p83
      %p85 = scmp.ne.s32.totalorder %s77, %s80
      %p86 = scmp.eq.s32.totalorder %s29, 0
      %p87 = por %p85, %p86
      %p88 = scmp.ne.s32.totalorder %s77, %s80
      %p89 = scmp.eq.s32.totalorder %s34, 3
      %p90 = por %p88, %p89
      %p91 = scmp.ne.s32.totalorder %s80, %s81
      %p92 = scmp.eq.s32.totalorder %s34, 0
      %p93 = por %p91, %p92
      %p94 = scmp.ne.s32.totalorder %s80, %s81
      %p95 = scmp.eq.s32.totalorder %s35, 3
      %p96 = por %p94, %p95
      %p98 = scmp.ne.s32.totalorder %s81, %s97
      %p99 = scmp.eq.s32.totalorder %s35, 0
      %p100 = por %p98, %p99
      %s102 = sadd.s32 %s101, 1
      %p105 = scmp.eq.s32.totalorder %s29, 3
      %p106 = scmp.ne.s32.totalorder %s101, %s103
      %p107 = scmp.eq.s32.totalorder %s29, 0
      %p108 = por %p106, %p107
      %p109 = scmp.ne.s32.totalorder %s101, %s103
      %p110 = scmp.eq.s32.totalorder %s34, 3
      %p111 = por %p109, %p110
      %p112 = scmp.ne.s32.totalorder %s103, %s104
      %p113 = scmp.eq.s32.totalorder %s34, 0
      %p114 = por %p112, %p113
      %p115 = scmp.ne.s32.totalorder %s103, %s104
      %p116 = scmp.eq.s32.totalorder %s35, 3
      %p117 = por %p115, %p116
      %p119 = scmp.ne.s32.totalorder %s104, %s118
      %p120 = scmp.eq.s32.totalorder %s35, 0
      %p121 = por %p119, %p120
      %s123 = sadd.s32 %s122, 1
      %p126 = scmp.eq.s32.totalorder %s29, 3
      %p127 = scmp.ne.s32.totalorder %s122, %s124
      %p128 = scmp.eq.s32.totalorder %s29, 0
      %p129 = por %p127, %p128
      %p130 = scmp.ne.s32.totalorder %s122, %s124
      %p131 = scmp.eq.s32.totalorder %s34, 3
      %p132 = por %p130, %p131
      %p133 = scmp.ne.s32.totalorder %s124, %s125
      %p134 = scmp.eq.s32.totalorder %s34, 0
      %p135 = por %p133, %p134
      %p136 = scmp.ne.s32.totalorder %s124, %s125
      %p137 = scmp.eq.s32.totalorder %s35, 3
      %p138 = por %p136, %p137
      %p140 = scmp.ne.s32.totalorder %s125, %s139
      %p141 = scmp.eq.s32.totalorder %s35, 0
      %p142 = por %p140, %p141
      %s143 = ssub.s32 %s37, %s44
      %p144 = scmp.eq.s32.totalorder %s143, 0
      %s146 = sadd.s32 %s145, 1
      %s147 = scalar_select %p144, %s145, %s146
      %p150 = pneg %p144
      %p151 = scmp.eq.s32.totalorder %s29, 3
      %p152 = por %p150, %p151
      %p153 = scmp.ne.s32.totalorder %s145, %s148
      %p154 = scmp.eq.s32.totalorder %s29, 0
      %p155 = por %p153, %p154
      %p156 = scmp.ne.s32.totalorder %s145, %s148
      %p157 = scmp.eq.s32.totalorder %s34, 3
      %p158 = por %p156, %p157
      %p159 = scmp.ne.s32.totalorder %s148, %s149
      %p160 = scmp.eq.s32.totalorder %s34, 0
      %p161 = por %p159, %p160
      %p162 = scmp.ne.s32.totalorder %s148, %s149
      %p163 = scmp.eq.s32.totalorder %s35, 3
      %p164 = por %p162, %p163
      %p166 = scmp.ne.s32.totalorder %s149, %s165
      %p167 = scmp.eq.s32.totalorder %s35, 0
      %p168 = por %p166, %p167
      %s169 = ssub.s32 %s37, %s44
      %p170 = scmp.eq.s32.totalorder %s169, 0
      %s172 = sadd.s32 %s171, 1
      %s173 = scalar_select %p170, %s171, %s172
      %p176 = pneg %p170
      %p177 = scmp.eq.s32.totalorder %s29, 3
      %p178 = por %p176, %p177
      %p179 = scmp.ne.s32.totalorder %s171, %s174
      %p180 = scmp.eq.s32.totalorder %s29, 0
      %p181 = por %p179, %p180
      %p182 = scmp.ne.s32.totalorder %s171, %s174
      %p183 = scmp.eq.s32.totalorder %s34, 3
      %p184 = por %p182, %p183
      %p185 = scmp.ne.s32.totalorder %s174, %s175
      %p186 = scmp.eq.s32.totalorder %s34, 0
      %p187 = por %p185, %p186
      %p188 = scmp.ne.s32.totalorder %s174, %s175
      %p189 = scmp.eq.s32.totalorder %s35, 3
      %p190 = por %p188, %p189
      %p192 = scmp.ne.s32.totalorder %s175, %s191
      %p193 = scmp.eq.s32.totalorder %s35, 0
      %p194 = por %p192, %p193
      %s195 = ssub.s32 %s37, %s44
      %p196 = scmp.eq.s32.totalorder %s195, 0
      %s198 = sadd.s32 %s197, 1
      %s199 = scalar_select %p196, %s197, %s198
      %p202 = pneg %p196
      %p203 = scmp.eq.s32.totalorder %s29, 3
      %p204 = por %p202, %p203
      %p205 = scmp.ne.s32.totalorder %s197, %s200
      %p206 = scmp.eq.s32.totalorder %s29, 0
      %p207 = por %p205, %p206
      %p208 = scmp.ne.s32.totalorder %s197, %s200
      %p209 = scmp.eq.s32.totalorder %s34, 3
      %p210 = por %p208, %p209
      %p211 = scmp.ne.s32.totalorder %s200, %s201
      %p212 = scmp.eq.s32.totalorder %s34, 0
      %p213 = por %p211, %p212
      %p214 = scmp.ne.s32.totalorder %s200, %s201
      %p215 = scmp.eq.s32.totalorder %s35, 3
      %p216 = por %p214, %p215
      %p218 = scmp.ne.s32.totalorder %s201, %s217
      %p219 = scmp.eq.s32.totalorder %s35, 0
      %p220 = por %p218, %p219
      %s221 = ssub.s32 %s37, %s44
      %p222 = scmp.eq.s32.totalorder %s221, 0
      %s224 = sadd.s32 %s223, 1
      %s225 = scalar_select %p222, %s223, %s224
      %p228 = pneg %p222
      %p229 = scmp.eq.s32.totalorder %s29, 3
      %p230 = por %p228, %p229
      %p231 = scmp.ne.s32.totalorder %s223, %s226
      %p232 = scmp.eq.s32.totalorder %s29, 0
      %p233 = por %p231, %p232
      %p234 = scmp.ne.s32.totalorder %s223, %s226
      %p235 = scmp.eq.s32.totalorder %s34, 3
      %p236 = por %p234, %p235
      %p237 = scmp.ne.s32.totalorder %s226, %s227
      %p238 = scmp.eq.s32.totalorder %s34, 0
      %p239 = por %p237, %p238
      %p240 = scmp.ne.s32.totalorder %s226, %s227
      %p241 = scmp.eq.s32.totalorder %s35, 3
      %p242 = por %p240, %p241
      %p244 = scmp.ne.s32.totalorder %s227, %s243
      %p245 = scmp.eq.s32.totalorder %s35, 0
      %p246 = por %p244, %p245
      %s247 = ssub.s32 %s37, %s44
      %p248 = scmp.eq.s32.totalorder %s247, 0
      %s250 = sadd.s32 %s249, 1
      %s251 = scalar_select %p248, %s249, %s250
      %p254 = pneg %p248
      %p255 = scmp.eq.s32.totalorder %s29, 3
      %p256 = por %p254, %p255
      %p257 = scmp.ne.s32.totalorder %s249, %s252
      %p258 = scmp.eq.s32.totalorder %s29, 0
      %p259 = por %p257, %p258
      %p260 = scmp.ne.s32.totalorder %s249, %s252
      %p261 = scmp.eq.s32.totalorder %s34, 3
      %p262 = por %p260, %p261
      %p263 = scmp.ne.s32.totalorder %s252, %s253
      %p264 = scmp.eq.s32.totalorder %s34, 0
      %p265 = por %p263, %p264
      %p266 = scmp.ne.s32.totalorder %s252, %s253
      %p267 = scmp.eq.s32.totalorder %s35, 3
      %p268 = por %p266, %p267
      %p270 = scmp.ne.s32.totalorder %s253, %s269
      %p271 = scmp.eq.s32.totalorder %s35, 0
      %p272 = por %p270, %p271
      %s273 = ssub.s32 %s37, %s44
      %p274 = scmp.eq.s32.totalorder %s273, 0
      %s276 = sadd.s32 %s275, 1
      %s277 = scalar_select %p274, %s275, %s276
      %p280 = pneg %p274
      %p281 = scmp.eq.s32.totalorder %s29, 3
      %p282 = por %p280, %p281
      %p283 = scmp.ne.s32.totalorder %s275, %s278
      %p284 = scmp.eq.s32.totalorder %s29, 0
      %p285 = por %p283, %p284
      %p286 = scmp.ne.s32.totalorder %s275, %s278
      %p287 = scmp.eq.s32.totalorder %s34, 3
      %p288 = por %p286, %p287
      %p289 = scmp.ne.s32.totalorder %s278, %s279
      %p290 = scmp.eq.s32.totalorder %s34, 0
      %p291 = por %p289, %p290
      %p292 = scmp.ne.s32.totalorder %s278, %s279
      %p293 = scmp.eq.s32.totalorder %s35, 3
      %p294 = por %p292, %p293
      %p296 = scmp.ne.s32.totalorder %s279, %s295
      %p297 = scmp.eq.s32.totalorder %s35, 0
      %p298 = por %p296, %p297
      %s299 = ssub.s32 %s37, %s44
      %p300 = scmp.eq.s32.totalorder %s299, 0
      %s302 = sadd.s32 %s301, 1
      %s303 = scalar_select %p300, %s301, %s302
      %p306 = pneg %p300
      %p307 = scmp.eq.s32.totalorder %s29, 3
      %p308 = por %p306, %p307
      %p309 = scmp.ne.s32.totalorder %s301, %s304
      %p310 = scmp.eq.s32.totalorder %s29, 0
      %p311 = por %p309, %p310
      %p312 = scmp.ne.s32.totalorder %s301, %s304
      %p313 = scmp.eq.s32.totalorder %s34, 3
      %p314 = por %p312, %p313
      %p315 = scmp.ne.s32.totalorder %s304, %s305
      %p316 = scmp.eq.s32.totalorder %s34, 0
      %p317 = por %p315, %p316
      %p318 = scmp.ne.s32.totalorder %s304, %s305
      %p319 = scmp.eq.s32.totalorder %s35, 3
      %p320 = por %p318, %p319
      %p322 = scmp.ne.s32.totalorder %s305, %s321
      %p323 = scmp.eq.s32.totalorder %s35, 0
      %p324 = por %p322, %p323
      %s325 = ssub.s32 %s37, %s44
      %p326 = scmp.eq.s32.totalorder %s325, 0
      %s328 = sadd.s32 %s327, 1
      %s329 = scalar_select %p326, %s327, %s328
      %p332 = pneg %p326
      %p333 = scmp.eq.s32.totalorder %s29, 3
      %p334 = por %p332, %p333
      %p335 = scmp.ne.s32.totalorder %s327, %s330
      %p336 = scmp.eq.s32.totalorder %s29, 0
      %p337 = por %p335, %p336
      %p338 = scmp.ne.s32.totalorder %s327, %s330
      %p339 = scmp.eq.s32.totalorder %s34, 3
      %p340 = por %p338, %p339
      %p341 = scmp.ne.s32.totalorder %s330, %s331
      %p342 = scmp.eq.s32.totalorder %s34, 0
      %p343 = por %p341, %p342
      %p344 = scmp.ne.s32.totalorder %s330, %s331
      %p345 = scmp.eq.s32.totalorder %s35, 3
      %p346 = por %p344, %p345
      %p348 = scmp.ne.s32.totalorder %s331, %s347
      %p349 = scmp.eq.s32.totalorder %s35, 0
      %p350 = por %p348, %p349
      %s351 = ssub.s32 %s37, %s44
      %p352 = scmp.eq.s32.totalorder %s351, 0
      %s354 = sadd.s32 %s353, 1
      %s355 = scalar_select %p352, %s353, %s354
      %p358 = pneg %p352
      %p359 = scmp.eq.s32.totalorder %s29, 3
      %p360 = por %p358, %p359
      %p361 = scmp.ne.s32.totalorder %s353, %s356
      %p362 = scmp.eq.s32.totalorder %s29, 0
      %p363 = por %p361, %p362
      %p364 = scmp.ne.s32.totalorder %s353, %s356
      %p365 = scmp.eq.s32.totalorder %s34, 3
      %p366 = por %p364, %p365
      %p367 = scmp.ne.s32.totalorder %s356, %s357
      %p368 = scmp.eq.s32.totalorder %s34, 0
      %p369 = por %p367, %p368
      %p370 = scmp.ne.s32.totalorder %s356, %s357
      %p371 = scmp.eq.s32.totalorder %s35, 3
      %p372 = por %p370, %p371
      %p374 = scmp.ne.s32.totalorder %s357, %s373
      %p375 = scmp.eq.s32.totalorder %s35, 0
      %p376 = por %p374, %p375
      %s377 = ssub.s32 %s37, %s44
      %p378 = scmp.eq.s32.totalorder %s377, 0
      %s380 = sadd.s32 %s379, 1
      %s381 = scalar_select %p378, %s379, %s380
      %p384 = pneg %p378
      %p385 = scmp.eq.s32.totalorder %s29, 3
      %p386 = por %p384, %p385
      %p387 = scmp.ne.s32.totalorder %s379, %s382
      %p388 = scmp.eq.s32.totalorder %s29, 0
      %p389 = por %p387, %p388
      %p390 = scmp.ne.s32.totalorder %s379, %s382
      %p391 = scmp.eq.s32.totalorder %s34, 3
      %p392 = por %p390, %p391
      %p393 = scmp.ne.s32.totalorder %s382, %s383
      %p394 = scmp.eq.s32.totalorder %s34, 0
      %p395 = por %p393, %p394
      %p396 = scmp.ne.s32.totalorder %s382, %s383
      %p397 = scmp.eq.s32.totalorder %s35, 3
      %p398 = por %p396, %p397
      %p400 = scmp.ne.s32.totalorder %s383, %s399
      %p401 = scmp.eq.s32.totalorder %s35, 0
      %p402 = por %p400, %p401
      %s403 = ssub.s32 %s37, %s44
      %p404 = scmp.eq.s32.totalorder %s403, 0
      %s406 = sadd.s32 %s405, 1
      %s407 = scalar_select %p404, %s405, %s406
      %p410 = pneg %p404
      %p411 = scmp.eq.s32.totalorder %s29, 3
      %p412 = por %p410, %p411
      %p413 = scmp.ne.s32.totalorder %s405, %s408
      %p414 = scmp.eq.s32.totalorder %s29, 0
      %p415 = por %p413, %p414
      %p416 = scmp.ne.s32.totalorder %s405, %s408
      %p417 = scmp.eq.s32.totalorder %s34, 3
      %p418 = por %p416, %p417
      %p419 = scmp.ne.s32.totalorder %s408, %s409
      %p420 = scmp.eq.s32.totalorder %s34, 0
      %p421 = por %p419, %p420
      %p422 = scmp.ne.s32.totalorder %s408, %s409
      %p423 = scmp.eq.s32.totalorder %s35, 3
      %p424 = por %p422, %p423
      %p426 = scmp.ne.s32.totalorder %s409, %s425
      %p427 = scmp.eq.s32.totalorder %s35, 0
      %p428 = por %p426, %p427
      %s429 = ssub.s32 %s37, %s44
      %p430 = scmp.eq.s32.totalorder %s429, 0
      %s432 = sadd.s32 %s431, 1
      %s433 = scalar_select %p430, %s431, %s432
      %p436 = pneg %p430
      %p437 = scmp.eq.s32.totalorder %s29, 3
      %p438 = por %p436, %p437
      %p439 = scmp.ne.s32.totalorder %s431, %s434
      %p440 = scmp.eq.s32.totalorder %s29, 0
      %p441 = por %p439, %p440
      %p442 = scmp.ne.s32.totalorder %s431, %s434
      %p443 = scmp.eq.s32.totalorder %s34, 3
      %p444 = por %p442, %p443
      %p445 = scmp.ne.s32.totalorder %s434, %s435
      %p446 = scmp.eq.s32.totalorder %s34, 0
      %p447 = por %p445, %p446
      %p448 = scmp.ne.s32.totalorder %s434, %s435
      %p449 = scmp.eq.s32.totalorder %s35, 3
      %p450 = por %p448, %p449
      %p452 = scmp.ne.s32.totalorder %s435, %s451
      %p453 = scmp.eq.s32.totalorder %s35, 0
      %p454 = por %p452, %p453
      %s455 = ssub.s32 %s36, %s48
      %p456 = scmp.eq.s32.totalorder %s455, 0
      %s458 = sadd.s32 %s457, 1
      %s459 = scalar_select %p456, %s457, %s458
      %p462 = pneg %p456
      %p463 = scmp.eq.s32.totalorder %s29, 3
      %p464 = por %p462, %p463
      %p465 = scmp.ne.s32.totalorder %s457, %s460
      %p466 = scmp.eq.s32.totalorder %s29, 0
      %p467 = por %p465, %p466
      %p468 = scmp.ne.s32.totalorder %s457, %s460
      %p469 = scmp.eq.s32.totalorder %s34, 3
      %p470 = por %p468, %p469
      %p471 = scmp.ne.s32.totalorder %s460, %s461
      %p472 = scmp.eq.s32.totalorder %s34, 0
      %p473 = por %p471, %p472
      %p474 = scmp.ne.s32.totalorder %s460, %s461
      %p475 = scmp.eq.s32.totalorder %s35, 3
      %p476 = por %p474, %p475
      %p478 = scmp.ne.s32.totalorder %s461, %s477
      %p479 = scmp.eq.s32.totalorder %s35, 0
      %p480 = por %p478, %p479
      %p481 = scmp.le.s32.totalorder 1, %s29
      %p482 = scmp.lt.s32.totalorder %s29, 5
      %p483 = pnand %p481, %p482
      %p484 = pneg %p483
      // Predicated region
      $region9: #{tpu_custom_call.1} parent=5 // pred_check
        _
      $region10: #{tpu_custom_call.1} parent=5 // pred_check_branch
        %486 = sbr.rel (%p483) target = $region12
      $region11: #{tpu_custom_call.1} parent=5 // pred_region
        %s487 = ssub.s32 %s29, 1
        // Predicated region
        $region13: #{tpu_custom_call.1} parent=11 // pred_check
          %p488 = pneg %p114
        $region14: #{tpu_custom_call.1} parent=11 // pred_check_branch
          %490 = sbr.rel (%p488) target = $region16
        $region15: #{tpu_custom_call.1} parent=11 // pred_region
          _
        $region16: #{tpu_custom_call.1} parent=11 // pred_fallthru
          _
        // Predicated region
        $region17: #{tpu_custom_call.1} parent=11 // pred_check
          %p491 = pneg %p135
        $region18: #{tpu_custom_call.1} parent=11 // pred_check_branch
          %493 = sbr.rel (%p491) target = $region20
        $region19: #{tpu_custom_call.1} parent=11 // pred_region
          %s495 = ssub.s32 16, 16
          %496 = vsyncadd [#allocation8], %s495
          %s498 = sshll.u32 [#allocation7], 4
          %s499 = int_to_ptr.vmem [resolvable:$true] %s498
          %501 = dma.hbm_to_vmem [thread:$0]  %s3, 16, %s499, [#allocation8]
        $region20: #{tpu_custom_call.1} parent=11 // pred_fallthru
          _
      $region12: #{tpu_custom_call.1} parent=5 // pred_fallthru
        _
      %p502 = scmp.lt.s32.totalorder %s29, 4
      // Predicated region
      $region21: #{tpu_custom_call.1} parent=5 // pred_check
        %p503 = pneg %p502
      $region22: #{tpu_custom_call.1} parent=5 // pred_check_branch
        %505 = sbr.rel (%p503) target = $region24
      $region23: #{tpu_custom_call.1} parent=5 // pred_region
        // Predicated region
        $region25: #{tpu_custom_call.1} parent=23 // pred_check
          %p506 = pneg %p61
        $region26: #{tpu_custom_call.1} parent=23 // pred_check_branch
          %508 = sbr.rel (%p506) target = $region28
        $region27: #{tpu_custom_call.1} parent=23 // pred_region
          %s509 = sand.u32 %s51, 1
          %s510 = scalar_lea.sflag [#allocation5], %s509
          %s511 = sand.u32 %s51, 1
          %s512 = smul.addr %s511, 8
          %s513 = scalar_lea.vmem [#allocation4], %s512
          %s515 = ssub.s32 128, 128
          %516 = vsyncadd %s510, %s515
          %s517 = smul.addr %s36, 128
          %s518 = scalar_lea.hbm %s0, %s517
          %s520 = sshll.u32 %s513, 4
          %s521 = int_to_ptr.vmem [resolvable:$true] %s520
          %523 = dma.hbm_to_vmem [thread:$0]  %s518, 128, %s521, %s510
        $region28: #{tpu_custom_call.1} parent=23 // pred_fallthru
          _
        // Predicated region
        $region29: #{tpu_custom_call.1} parent=23 // pred_check
          %p524 = pneg %p87
        $region30: #{tpu_custom_call.1} parent=23 // pred_check_branch
          %526 = sbr.rel (%p524) target = $region32
        $region31: #{tpu_custom_call.1} parent=23 // pred_region
          %p527 = scmp.lt.s32.totalorder %s36, 1
          %s528 = scalar_select %p527, %s36, 1
          %s529 = scalar_lea.vmem %s1, %s528
        $region32: #{tpu_custom_call.1} parent=23 // pred_fallthru
          _
        // Predicated region
        $region33: #{tpu_custom_call.1} parent=23 // pred_check
          %p530 = pneg %p155
        $region34: #{tpu_custom_call.1} parent=23 // pred_check_branch
          %532 = sbr.rel (%p530) target = $region36
        $region35: #{tpu_custom_call.1} parent=23 // pred_region
          %p533 = scmp.lt.s32.totalorder %s37, 1
          %s534 = scalar_select %p533, %s37, 1
          %s535 = smul.addr %s534, 4
          %s536 = smul.addr %s535, 4
          %s537 = scalar_lea.vmem %s4, %s536
        $region36: #{tpu_custom_call.1} parent=23 // pred_fallthru
          _
        // Predicated region
        $region37: #{tpu_custom_call.1} parent=23 // pred_check
          %p538 = pneg %p181
        $region38: #{tpu_custom_call.1} parent=23 // pred_check_branch
          %540 = sbr.rel (%p538) target = $region40
        $region39: #{tpu_custom_call.1} parent=23 // pred_region
          %p541 = scmp.lt.s32.totalorder %s37, 1
          %s542 = scalar_select %p541, %s37, 1
          %s543 = scalar_lea.vmem %s5, %s542
        $region40: #{tpu_custom_call.1} parent=23 // pred_fallthru
          _
        // Predicated region
        $region41: #{tpu_custom_call.1} parent=23 // pred_check
          %p544 = pneg %p207
        $region42: #{tpu_custom_call.1} parent=23 // pred_check_branch
          %546 = sbr.rel (%p544) target = $region44
        $region43: #{tpu_custom_call.1} parent=23 // pred_region
          %p547 = scmp.lt.s32.totalorder %s37, 1
          %s548 = scalar_select %p547, %s37, 1
          %s549 = smul.addr %s548, 4
          %s550 = smul.addr %s549, 4
          %s551 = scalar_lea.vmem %s6, %s550
        $region44: #{tpu_custom_call.1} parent=23 // pred_fallthru
          _
        // Predicated region
        $region45: #{tpu_custom_call.1} parent=23 // pred_check
          %p552 = pneg %p233
        $region46: #{tpu_custom_call.1} parent=23 // pred_check_branch
          %554 = sbr.rel (%p552) target = $region48
        $region47: #{tpu_custom_call.1} parent=23 // pred_region
          %p555 = scmp.lt.s32.totalorder %s37, 1
          %s556 = scalar_select %p555, %s37, 1
          %s557 = scalar_lea.vmem %s7, %s556
        $region48: #{tpu_custom_call.1} parent=23 // pred_fallthru
          _
        // Predicated region
        $region49: #{tpu_custom_call.1} parent=23 // pred_check
          %p558 = pneg %p259
        $region50: #{tpu_custom_call.1} parent=23 // pred_check_branch
          %560 = sbr.rel (%p558) target = $region52
        $region51: #{tpu_custom_call.1} parent=23 // pred_region
          %p561 = scmp.lt.s32.totalorder %s37, 1
          %s562 = scalar_select %p561, %s37, 1
          %s563 = scalar_lea.vmem %s8, %s562
        $region52: #{tpu_custom_call.1} parent=23 // pred_fallthru
          _
        // Predicated region
        $region53: #{tpu_custom_call.1} parent=23 // pred_check
          %p564 = pneg %p285
        $region54: #{tpu_custom_call.1} parent=23 // pred_check_branch
          %566 = sbr.rel (%p564) target = $region56
        $region55: #{tpu_custom_call.1} parent=23 // pred_region
          %p567 = scmp.lt.s32.totalorder %s37, 1
          %s568 = scalar_select %p567, %s37, 1
          %s569 = scalar_lea.vmem %s9, %s568
        $region56: #{tpu_custom_call.1} parent=23 // pred_fallthru
          _
        // Predicated region
        $region57: #{tpu_custom_call.1} parent=23 // pred_check
          %p570 = pneg %p311
        $region58: #{tpu_custom_call.1} parent=23 // pred_check_branch
          %572 = sbr.rel (%p570) target = $region60
        $region59: #{tpu_custom_call.1} parent=23 // pred_region
          %p573 = scmp.lt.s32.totalorder %s37, 1
          %s574 = scalar_select %p573, %s37, 1
          %s575 = smul.addr %s574, 4
          %s576 = smul.addr %s575, 4
          %s577 = scalar_lea.vmem %s10, %s576
        $region60: #{tpu_custom_call.1} parent=23 // pred_fallthru
          _
        // Predicated region
        $region61: #{tpu_custom_call.1} parent=23 // pred_check
          %p578 = pneg %p337
        $region62: #{tpu_custom_call.1} parent=23 // pred_check_branch
          %580 = sbr.rel (%p578) target = $region64
        $region63: #{tpu_custom_call.1} parent=23 // pred_region
          %p581 = scmp.lt.s32.totalorder %s37, 1
          %s582 = scalar_select %p581, %s37, 1
          %s583 = scalar_lea.vmem %s11, %s582
        $region64: #{tpu_custom_call.1} parent=23 // pred_fallthru
          _
        // Predicated region
        $region65: #{tpu_custom_call.1} parent=23 // pred_check
          %p584 = pneg %p363
        $region66: #{tpu_custom_call.1} parent=23 // pred_check_branch
          %586 = sbr.rel (%p584) target = $region68
        $region67: #{tpu_custom_call.1} parent=23 // pred_region
          %p587 = scmp.lt.s32.totalorder %s37, 1
          %s588 = scalar_select %p587, %s37, 1
          %s589 = smul.addr %s588, 8
          %s590 = smul.addr %s589, 4
          %s591 = scalar_lea.vmem %s12, %s590
        $region68: #{tpu_custom_call.1} parent=23 // pred_fallthru
          _
        // Predicated region
        $region69: #{tpu_custom_call.1} parent=23 // pred_check
          %p592 = pneg %p389
        $region70: #{tpu_custom_call.1} parent=23 // pred_check_branch
          %594 = sbr.rel (%p592) target = $region72
        $region71: #{tpu_custom_call.1} parent=23 // pred_region
          %p595 = scmp.lt.s32.totalorder %s37, 1
          %s596 = scalar_select %p595, %s37, 1
          %s597 = scalar_lea.vmem %s13, %s596
        $region72: #{tpu_custom_call.1} parent=23 // pred_fallthru
          _
        // Predicated region
        $region73: #{tpu_custom_call.1} parent=23 // pred_check
          %p598 = pneg %p415
        $region74: #{tpu_custom_call.1} parent=23 // pred_check_branch
          %600 = sbr.rel (%p598) target = $region76
        $region75: #{tpu_custom_call.1} parent=23 // pred_region
          %p601 = scmp.lt.s32.totalorder %s37, 1
          %s602 = scalar_select %p601, %s37, 1
          %s603 = scalar_lea.vmem %s14, %s602
        $region76: #{tpu_custom_call.1} parent=23 // pred_fallthru
          _
        // Predicated region
        $region77: #{tpu_custom_call.1} parent=23 // pred_check
          %p604 = pneg %p441
        $region78: #{tpu_custom_call.1} parent=23 // pred_check_branch
          %606 = sbr.rel (%p604) target = $region80
        $region79: #{tpu_custom_call.1} parent=23 // pred_region
          %p607 = scmp.lt.s32.totalorder %s37, 1
          %s608 = scalar_select %p607, %s37, 1
          %s609 = scalar_lea.vmem %s15, %s608
        $region80: #{tpu_custom_call.1} parent=23 // pred_fallthru
          _
      $region24: #{tpu_custom_call.1} parent=5 // pred_fallthru
        _
      %p610 = scmp.le.s32.totalorder 1, %s29
      %p611 = scmp.lt.s32.totalorder %s29, 5
      %p612 = pnand %p610, %p611
      %p613 = pneg %p612
      // Predicated region
      $region81: #{tpu_custom_call.1} parent=5 // pred_check
        _
      $region82: #{tpu_custom_call.1} parent=5 // pred_check_branch
        %615 = sbr.rel (%p612) target = $region84
      $region83: #{tpu_custom_call.1} parent=5 // pred_region
        %s616 = ssub.s32 %s29, 1
        %s617 = sand.u32 %s54, 1
        %s618 = scalar_lea.sflag [#allocation5], %s617
        %s619 = sand.u32 %s54, 1
        %s620 = smul.addr %s619, 8
        %s621 = scalar_lea.vmem [#allocation4], %s620
        // Predicated region
        $region85: #{tpu_custom_call.1} parent=83 // pred_check
          %p622 = pneg %p67
        $region86: #{tpu_custom_call.1} parent=83 // pred_check_branch
          %624 = sbr.rel (%p622) target = $region88
        $region87: #{tpu_custom_call.1} parent=83 // pred_region
          %625 = dma.done %s618, 128
        $region88: #{tpu_custom_call.1} parent=83 // pred_fallthru
          _
        // Predicated region
        $region89: #{tpu_custom_call.1} parent=83 // pred_check
          %p626 = pneg %p135
        $region90: #{tpu_custom_call.1} parent=83 // pred_check_branch
          %628 = sbr.rel (%p626) target = $region92
        $region91: #{tpu_custom_call.1} parent=83 // pred_region
          %629 = dma.done [#allocation8], 16
        $region92: #{tpu_custom_call.1} parent=83 // pred_fallthru
          _
        %s630 = sand.u32 %s54, 1
        %s631 = scalar_lea.sflag [#allocation5], %s630
        %s632 = sand.u32 %s54, 1
        %s633 = smul.addr %s632, 8
        %s634 = scalar_lea.vmem [#allocation4], %s633
        %p635 = pneg %p67
        %p636 = pneg %p64
        %p637 = scmp.lt.s32.totalorder %s38, 1
        %s638 = scalar_select %p637, %s38, 1
        %s639 = scalar_lea.vmem %s1, %s638
        %p640 = pneg %p93
        %p641 = pneg %p90
        %p642 = pneg %p114
        %p643 = pneg %p111
        %p644 = pneg %p135
        %p645 = pneg %p132
        %p646 = scmp.lt.s32.totalorder %s39, 1
        %s647 = scalar_select %p646, %s39, 1
        %s648 = smul.addr %s647, 4
        %s649 = smul.addr %s648, 4
        %s650 = scalar_lea.vmem %s4, %s649
        %p651 = pneg %p161
        %p652 = pneg %p158
        %p653 = scmp.lt.s32.totalorder %s39, 1
        %s654 = scalar_select %p653, %s39, 1
        %s655 = scalar_lea.vmem %s5, %s654
        %p656 = pneg %p187
        %p657 = pneg %p184
        %p658 = scmp.lt.s32.totalorder %s39, 1
        %s659 = scalar_select %p658, %s39, 1
        %s660 = smul.addr %s659, 4
        %s661 = smul.addr %s660, 4
        %s662 = scalar_lea.vmem %s6, %s661
        %p663 = pneg %p213
        %p664 = pneg %p210
        %p665 = scmp.lt.s32.totalorder %s39, 1
        %s666 = scalar_select %p665, %s39, 1
        %s667 = scalar_lea.vmem %s7, %s666
        %p668 = pneg %p239
        %p669 = pneg %p236
        %p670 = scmp.lt.s32.totalorder %s39, 1
        %s671 = scalar_select %p670, %s39, 1
        %s672 = scalar_lea.vmem %s8, %s671
        %p673 = pneg %p265
        %p674 = pneg %p262
        %p675 = scmp.lt.s32.totalorder %s39, 1
        %s676 = scalar_select %p675, %s39, 1
        %s677 = scalar_lea.vmem %s9, %s676
        %p678 = pneg %p291
        %p679 = pneg %p288
        %p680 = scmp.lt.s32.totalorder %s39, 1
        %s681 = scalar_select %p680, %s39, 1
        %s682 = smul.addr %s681, 4
        %s683 = smul.addr %s682, 4
        %s684 = scalar_lea.vmem %s10, %s683
        %p685 = pneg %p317
        %p686 = pneg %p314
        %p687 = scmp.lt.s32.totalorder %s39, 1
        %s688 = scalar_select %p687, %s39, 1
        %s689 = scalar_lea.vmem %s11, %s688
        %p690 = pneg %p343
        %p691 = pneg %p340
        %p692 = scmp.lt.s32.totalorder %s39, 1
        %s693 = scalar_select %p692, %s39, 1
        %s694 = smul.addr %s693, 8
        %s695 = smul.addr %s694, 4
        %s696 = scalar_lea.vmem %s12, %s695
        %p697 = pneg %p369
        %p698 = pneg %p366
        %p699 = scmp.lt.s32.totalorder %s39, 1
        %s700 = scalar_select %p699, %s39, 1
        %s701 = scalar_lea.vmem %s13, %s700
        %p702 = pneg %p395
        %p703 = pneg %p392
        %p704 = scmp.lt.s32.totalorder %s39, 1
        %s705 = scalar_select %p704, %s39, 1
        %s706 = scalar_lea.vmem %s14, %s705
        %p707 = pneg %p421
        %p708 = pneg %p418
        %p709 = scmp.lt.s32.totalorder %s39, 1
        %s710 = scalar_select %p709, %s39, 1
        %s711 = scalar_lea.vmem %s15, %s710
        %p712 = pneg %p447
        %p713 = pneg %p444
        %p714 = pneg %p473
        %p715 = pneg %p470
        %s716 = sand.u32 %s460, 1
        %s717 = scalar_lea.sflag [#allocation6], %s716
        %s718 = sand.u32 %s460, 1
        %s719 = scalar_lea.vmem [#allocation9], %s718
        %p720 = scmp.lt.s32.totalorder %s38, 1
        %s721 = scalar_select %p720, %s38, 1
        %s722 = scalar_lea.vmem %s1, %s721
        %p723 = scmp.lt.s32.totalorder %s39, 1
        %s724 = scalar_select %p723, %s39, 1
        %s725 = smul.addr %s724, 4
        %s726 = smul.addr %s725, 4
        %s727 = scalar_lea.vmem %s4, %s726
        %p728 = scmp.lt.s32.totalorder %s39, 1
        %s729 = scalar_select %p728, %s39, 1
        %s730 = scalar_lea.vmem %s5, %s729
        %p731 = scmp.lt.s32.totalorder %s39, 1
        %s732 = scalar_select %p731, %s39, 1
        %s733 = smul.addr %s732, 4
        %s734 = smul.addr %s733, 4
        %s735 = scalar_lea.vmem %s6, %s734
        %p736 = scmp.lt.s32.totalorder %s39, 1
        %s737 = scalar_select %p736, %s39, 1
        %s738 = scalar_lea.vmem %s7, %s737
        %p739 = scmp.lt.s32.totalorder %s39, 1
        %s740 = scalar_select %p739, %s39, 1
        %s741 = scalar_lea.vmem %s8, %s740
        %p742 = scmp.lt.s32.totalorder %s39, 1
        %s743 = scalar_select %p742, %s39, 1
        %s744 = scalar_lea.vmem %s9, %s743
        %p745 = scmp.lt.s32.totalorder %s39, 1
        %s746 = scalar_select %p745, %s39, 1
        %s747 = smul.addr %s746, 4
        %s748 = smul.addr %s747, 4
        %s749 = scalar_lea.vmem %s10, %s748
        %p750 = scmp.lt.s32.totalorder %s39, 1
        %s751 = scalar_select %p750, %s39, 1
        %s752 = scalar_lea.vmem %s11, %s751
        %p753 = scmp.lt.s32.totalorder %s39, 1
        %s754 = scalar_select %p753, %s39, 1
        %s755 = smul.addr %s754, 8
        %s756 = smul.addr %s755, 4
        %s757 = scalar_lea.vmem %s12, %s756
        %p758 = scmp.lt.s32.totalorder %s39, 1
        %s759 = scalar_select %p758, %s39, 1
        %s760 = scalar_lea.vmem %s13, %s759
        %p761 = scmp.lt.s32.totalorder %s39, 1
        %s762 = scalar_select %p761, %s39, 1
        %s763 = scalar_lea.vmem %s14, %s762
        %p764 = scmp.lt.s32.totalorder %s39, 1
        %s765 = scalar_select %p764, %s39, 1
        %s766 = scalar_lea.vmem %s15, %s765
        %p768 = scmp.eq.s32.totalorder %s39, 0
        // Predicated region
        $region93: #{tpu_custom_call.1} parent=83 // pred_check
          %p769 = pneg %p768
        $region94: #{tpu_custom_call.1} parent=83 // pred_check_branch
          %771 = sbr.rel (%p769) target = $region96
        $region95: #{tpu_custom_call.1} parent=83 // pred_region
          %v772 = vld [vmem:[%s621] sm:$0xff]
          %v773 = vld [vmem:[%s2] sm:$0x1]
          %v774 = vld [vmem:[#allocation7] sm:$0x1]
          %vm775 = vcmask 261120
          %v776 = vsel %vm775, %v772, 0.0
          %777 = vadd.xlane.f32.xlu0 %v776
          %v778 = vpop.xlane.xlu0 %777
          %v779 = vrcp.pop 32.0
          %v780 = vmul.f32 %v778, %v779
          %v781 = vsub.f32 %v772, %v780
          %v782 = vmul.f32 %v781, %v781
          %v783 = vsel %vm775, %v782, 0.0
          %784 = vadd.xlane.f32.xlu0 %v783
          %v785 = vpop.xlane.xlu0 %784
          %v786 = vmul.f32 %v785, %v779
          %v787 = vadd.f32 %v786, 1e-12
          %v788 = vrsqrt.pop %v787
          %v789 = vmul.f32 %v781, %v788
          %v791 = vlaneseq
          %v792 = vshrl.u32 %v791, 7
          %v793 = vsub.s32 0, %v792
          %v794 = vrot.slane %v773, %v793
          %v796 = vmul.f32 %v789, %v794
          %v798 = vlaneseq
          %v799 = vshrl.u32 %v798, 7
          %v800 = vsub.s32 0, %v799
          %v801 = vrot.slane %v774, %v800
          %v803 = vadd.f32 %v796, %v801
          %804 = vst.msk [vmem:[#allocation2] sm:$0xff] %vm775, %v803
        $region96: #{tpu_custom_call.1} parent=83 // pred_fallthru
          _
        %v805 = vld [vmem:[#allocation2] sm:$0xff]
        %v806 = vld [vmem:[%s722] sm:$0x1]
        %v807 = vpack.c.bf16 %v805, %v805
        %v808 = vld [vmem:[%s727] sm:$0xf]
        %v809 = vld [vmem:[%s727 + $0x4] sm:$0xf]
        %v810 = vld [vmem:[%s727 + $0x8] sm:$0xf]
        %v811 = vld [vmem:[%s727 + $0xc] sm:$0xf]
        %v812 = vld [vmem:[%s730] sm:$0x1]
        %v814 = vlaneseq
        %v815 = vshrl.u32 %v814, 7
        %v816 = vsub.s32 0, %v815
        %v817 = vrot.slane %v812, %v816
        %v823 = vunpack.c.l.b16 %v808
        %v824 = vunpack.c.l.b16 %v809
        %v825 = vunpack.c.l.b16 %v810
        %v826 = vunpack.c.l.b16 %v811
        %v827 = vpack.c.b16 %v824, %v823
        %v828 = vpack.c.b16 %v826, %v825
        %vm831 = vcmask 261120
        %v833 = vsel %vm831, %v807, 0
        %835 = vmatprep.subr.bf16.mxu0 0
        %836 = vmatpush1.bf16.msra.mxu0 %v827
        %837 = vmatprep.subr.bf16.mxu0 0
        %838 = vmatpush1.bf16.msra.mxu0 %v828
        %839 = vmatprep.subr.bf16.mxu0 0
        %840 = vmatpush1.bf16.msra.mxu0 0
        %841 = vmatprep.subr.bf16.mxu0 0
        %842 = vmatpush1.bf16.msra.mxu0 0
        %843 = vmatprep.subr.bf16.mxu0 0
        %844 = vmatpush1.bf16.msra.mxu0 0
        %845 = vmatprep.subr.bf16.mxu0 0
        %846 = vmatpush1.bf16.msra.mxu0 0
        %847 = vmatprep.subr.bf16.mxu0 0
        %848 = vmatpush1.bf16.msra.mxu0 0
        %849 = vmatprep.subr.bf16.mxu0 0
        %850 = vmatpush1.bf16.msra.mxu0 0
        %851 = vmatprep.subr.bf16.mxu0 0
        %852 = vmatpush1.bf16.msra.mxu0 0
        %853 = vmatprep.subr.bf16.mxu0 0
        %854 = vmatpush1.bf16.msra.mxu0 0
        %855 = vmatprep.subr.bf16.mxu0 0
        %856 = vmatpush1.bf16.msra.mxu0 0
        %857 = vmatprep.subr.bf16.mxu0 0
        %858 = vmatpush1.bf16.msra.mxu0 0
        %859 = vmatprep.subr.bf16.mxu0 0
        %860 = vmatpush1.bf16.msra.mxu0 0
        %861 = vmatprep.subr.bf16.mxu0 0
        %862 = vmatpush1.bf16.msra.mxu0 0
        %863 = vmatprep.subr.bf16.mxu0 0
        %864 = vmatpush1.bf16.msra.mxu0 0
        %865 = vmatprep.subr.bf16.mxu0 0
        %866 = vmatpush1.bf16.msra.mxu0 0
        %867 = vmatprep.mubr.bf16.mxu0 0
        %868 = vmatmul.mubr.bf16.gmra.mrb[0].mxu0 %v833
        %v869 = vpop.f32.mrb[0].mxu0
        %v870 = vadd.f32 %v817, %v869
        %v871 = vpop.f32.mrb[0].mxu0
        %v872 = vpop.f32.mrb[0].mxu0
        %v873 = vpop.f32.mrb[0].mxu0
        %874 = vdwg.mxu0
        %v875 = vpack.c.bf16 %v870, %v870
        %877 = vrot.lane.b32.xlu0 %v875, 96
        %v878 = vpop.permute.xlu0 %877
        %vm879 = vcmask 130048
        %v881 = vsel %vm879, %v875, 0
        %v884 = vsel %vm879, %v878, 0
        %886 = vmatprep.subr.bf16.mxu0 0
        %887 = vmatpush1.bf16.xpose.msra.mxu0 %v884
        %888 = vmatprep.subr.bf16.mxu0 0
        %889 = vmatpush1.bf16.xpose.msra.mxu0 0
        %890 = vmatprep.subr.bf16.mxu0 0
        %891 = vmatpush1.bf16.xpose.msra.mxu0 0
        %892 = vmatprep.subr.bf16.mxu0 0
        %893 = vmatpush1.bf16.xpose.msra.mxu0 0
        %894 = vmatprep.subr.bf16.mxu0 0
        %895 = vmatpush1.bf16.xpose.msra.mxu0 0
        %896 = vmatprep.subr.bf16.mxu0 0
        %897 = vmatpush1.bf16.xpose.msra.mxu0 0
        %898 = vmatprep.subr.bf16.mxu0 0
        %899 = vmatpush1.bf16.xpose.msra.mxu0 0
        %900 = vmatprep.subr.bf16.mxu0 0
        %901 = vmatpush1.bf16.xpose.msra.mxu0 0
        %902 = vmatprep.subr.bf16.mxu0 0
        %903 = vmatpush1.bf16.xpose.msra.mxu0 0
        %904 = vmatprep.subr.bf16.mxu0 0
        %905 = vmatpush1.bf16.xpose.msra.mxu0 0
        %906 = vmatprep.subr.bf16.mxu0 0
        %907 = vmatpush1.bf16.xpose.msra.mxu0 0
        %908 = vmatprep.subr.bf16.mxu0 0
        %909 = vmatpush1.bf16.xpose.msra.mxu0 0
        %910 = vmatprep.subr.bf16.mxu0 0
        %911 = vmatpush1.bf16.xpose.msra.mxu0 0
        %912 = vmatprep.subr.bf16.mxu0 0
        %913 = vmatpush1.bf16.xpose.msra.mxu0 0
        %914 = vmatprep.subr.bf16.mxu0 0
        %915 = vmatpush1.bf16.xpose.msra.mxu0 0
        %916 = vmatprep.subr.bf16.mxu0 0
        %917 = vmatpush1.bf16.xpose.msra.mxu0 0
        %918 = vmatprep.mubr.bf16.mxu0 0
        %919 = vmatmul.mubr.bf16.gmra.mrb[0].mxu0 %v881
        %v920 = vpop.f32.mrb[0].mxu0
        %v921 = vadd.f32 0.0, %v920
        %v922 = vpop.f32.mrb[0].mxu0
        %v923 = vpop.f32.mrb[0].mxu0
        %v924 = vpop.f32.mrb[0].mxu0
        %925 = vdwg.mxu0
        %v926 = vmul.f32 %v921, 0.25
        %v928 = vlaneseq
        %v929 = vshrl.u32 %v928, 7
        %v930 = vsub.s32 0, %v929
        %v931 = vrot.slane %v806, %v930
        %v933 = vadd.f32 %v926, %v931
        %vm934 = vcmask 64512
        %v935 = vsel %vm934, %v933, -inf
        %936 = vmax.xlane.f32.xlu0 %v935
        %v937 = vpop.xlane.xlu0 %936
        %v938 = vsub.f32 %v933, %v937
        %v939 = vmul.f32 %v938, 1.442695
        %v940 = vpow.pop %v939
        %v941 = vsel %vm934, %v940, 0.0
        %942 = vadd.xlane.f32.xlu0 %v941
        %v943 = vpop.xlane.xlu0 %942
        %v944 = vrcp.pop %v943
        %v945 = vmul.f32 %v940, %v944
        %v946 = vpack.c.bf16 %v945, %v945
        %947 = vrot.lane.b32.xlu0 %v875, 64
        %v948 = vpop.permute.xlu0 %947
        %v950 = vsel %vm934, %v946, 0
        %vm952 = vcmask 1043456
        %v954 = vsel %vm952, %v948, 0
        %956 = vmatprep.subr.bf16.mxu0 0
        %957 = vmatpush1.bf16.msra.mxu0 %v954
        %958 = vmatprep.subr.bf16.mxu0 0
        %959 = vmatpush1.bf16.msra.mxu0 0
        %960 = vmatprep.subr.bf16.mxu0 0
        %961 = vmatpush1.bf16.msra.mxu0 0
        %962 = vmatprep.subr.bf16.mxu0 0
        %963 = vmatpush1.bf16.msra.mxu0 0
        %964 = vmatprep.subr.bf16.mxu0 0
        %965 = vmatpush1.bf16.msra.mxu0 0
        %966 = vmatprep.subr.bf16.mxu0 0
        %967 = vmatpush1.bf16.msra.mxu0 0
        %968 = vmatprep.subr.bf16.mxu0 0
        %969 = vmatpush1.bf16.msra.mxu0 0
        %970 = vmatprep.subr.bf16.mxu0 0
        %971 = vmatpush1.bf16.msra.mxu0 0
        %972 = vmatprep.subr.bf16.mxu0 0
        %973 = vmatpush1.bf16.msra.mxu0 0
        %974 = vmatprep.subr.bf16.mxu0 0
        %975 = vmatpush1.bf16.msra.mxu0 0
        %976 = vmatprep.subr.bf16.mxu0 0
        %977 = vmatpush1.bf16.msra.mxu0 0
        %978 = vmatprep.subr.bf16.mxu0 0
        %979 = vmatpush1.bf16.msra.mxu0 0
        %980 = vmatprep.subr.bf16.mxu0 0
        %981 = vmatpush1.bf16.msra.mxu0 0
        %982 = vmatprep.subr.bf16.mxu0 0
        %983 = vmatpush1.bf16.msra.mxu0 0
        %984 = vmatprep.subr.bf16.mxu0 0
        %985 = vmatpush1.bf16.msra.mxu0 0
        %986 = vmatprep.subr.bf16.mxu0 0
        %987 = vmatpush1.bf16.msra.mxu0 0
        %988 = vmatprep.mubr.bf16.mxu0 0
        %989 = vmatmul.mubr.bf16.gmra.mrb[0].mxu0 %v950
        %v990 = vpop.f32.mrb[0].mxu0
        %v991 = vadd.f32 0.0, %v990
        %v992 = vpop.f32.mrb[0].mxu0
        %v993 = vpop.f32.mrb[0].mxu0
        %v994 = vpop.f32.mrb[0].mxu0
        %995 = vdwg.mxu0
        %996 = vst.msk [vmem:[#allocation3] sm:$0xff] %vm879, %v991
        %997 = vrot.lane.b32.xlu0 %v875, 112
        %v998 = vpop.permute.xlu0 %997
        %999 = vrot.lane.b32.xlu0 %v875, 80
        %v1000 = vpop.permute.xlu0 %999
        %v1002 = vsel %vm879, %v998, 0
        %v1005 = vsel %vm879, %v1000, 0
        %1007 = vmatprep.subr.bf16.mxu0 0
        %1008 = vmatpush1.bf16.xpose.msra.mxu0 %v1005
        %1009 = vmatprep.subr.bf16.mxu0 0
        %1010 = vmatpush1.bf16.xpose.msra.mxu0 0
        %1011 = vmatprep.subr.bf16.mxu0 0
        %1012 = vmatpush1.bf16.xpose.msra.mxu0 0
        %1013 = vmatprep.subr.bf16.mxu0 0
        %1014 = vmatpush1.bf16.xpose.msra.mxu0 0
        %1015 = vmatprep.subr.bf16.mxu0 0
        %1016 = vmatpush1.bf16.xpose.msra.mxu0 0
        %1017 = vmatprep.subr.bf16.mxu0 0
        %1018 = vmatpush1.bf16.xpose.msra.mxu0 0
        %1019 = vmatprep.subr.bf16.mxu0 0
        %1020 = vmatpush1.bf16.xpose.msra.mxu0 0
        %1021 = vmatprep.subr.bf16.mxu0 0
        %1022 = vmatpush1.bf16.xpose.msra.mxu0 0
        %1023 = vmatprep.subr.bf16.mxu0 0
        %1024 = vmatpush1.bf16.xpose.msra.mxu0 0
        %1025 = vmatprep.subr.bf16.mxu0 0
        %1026 = vmatpush1.bf16.xpose.msra.mxu0 0
        %1027 = vmatprep.subr.bf16.mxu0 0
        %1028 = vmatpush1.bf16.xpose.msra.mxu0 0
        %1029 = vmatprep.subr.bf16.mxu0 0
        %1030 = vmatpush1.bf16.xpose.msra.mxu0 0
        %1031 = vmatprep.subr.bf16.mxu0 0
        %1032 = vmatpush1.bf16.xpose.msra.mxu0 0
        %1033 = vmatprep.subr.bf16.mxu0 0
        %1034 = vmatpush1.bf16.xpose.msra.mxu0 0
        %1035 = vmatprep.subr.bf16.mxu0 0
        %1036 = vmatpush1.bf16.xpose.msra.mxu0 0
        %1037 = vmatprep.subr.bf16.mxu0 0
        %1038 = vmatpush1.bf16.xpose.msra.mxu0 0
        %1039 = vmatprep.mubr.bf16.mxu0 0
        %1040 = vmatmul.mubr.bf16.gmra.mrb[0].mxu0 %v1002
        %v1041 = vpop.f32.mrb[0].mxu0
        %v1042 = vadd.f32 0.0, %v1041
        %v1043 = vpop.f32.mrb[0].mxu0
        %v1044 = vpop.f32.mrb[0].mxu0
        %v1045 = vpop.f32.mrb[0].mxu0
        %1046 = vdwg.mxu0
        %v1047 = vmul.f32 %v1042, 0.25
        %v1048 = vadd.f32 %v1047, %v931
        %v1049 = vsel %vm934, %v1048, -inf
        %1050 = vmax.xlane.f32.xlu0 %v1049
        %v1051 = vpop.xlane.xlu0 %1050
        %v1052 = vsub.f32 %v1048, %v1051
        %v1053 = vmul.f32 %v1052, 1.442695
        %v1054 = vpow.pop %v1053
        %v1055 = vsel %vm934, %v1054, 0.0
        %1056 = vadd.xlane.f32.xlu0 %v1055
        %v1057 = vpop.xlane.xlu0 %1056
        %v1058 = vrcp.pop %v1057
        %v1059 = vmul.f32 %v1054, %v1058
        %v1060 = vpack.c.bf16 %v1059, %v1059
        %1061 = vrot.lane.b32.xlu0 %v875, 48
        %v1062 = vpop.permute.xlu0 %1061
        %v1064 = vsel %vm934, %v1060, 0
        %v1067 = vsel %vm952, %v1062, 0
        %1069 = vmatprep.subr.bf16.mxu0 0
        %1070 = vmatpush1.bf16.msra.mxu0 %v1067
        %1071 = vmatprep.subr.bf16.mxu0 0
        %1072 = vmatpush1.bf16.msra.mxu0 0
        %1073 = vmatprep.subr.bf16.mxu0 0
        %1074 = vmatpush1.bf16.msra.mxu0 0
        %1075 = vmatprep.subr.bf16.mxu0 0
        %1076 = vmatpush1.bf16.msra.mxu0 0
        %1077 = vmatprep.subr.bf16.mxu0 0
        %1078 = vmatpush1.bf16.msra.mxu0 0
        %1079 = vmatprep.subr.bf16.mxu0 0
        %1080 = vmatpush1.bf16.msra.mxu0 0
        %1081 = vmatprep.subr.bf16.mxu0 0
        %1082 = vmatpush1.bf16.msra.mxu0 0
        %1083 = vmatprep.subr.bf16.mxu0 0
        %1084 = vmatpush1.bf16.msra.mxu0 0
        %1085 = vmatprep.subr.bf16.mxu0 0
        %1086 = vmatpush1.bf16.msra.mxu0 0
        %1087 = vmatprep.subr.bf16.mxu0 0
        %1088 = vmatpush1.bf16.msra.mxu0 0
        %1089 = vmatprep.subr.bf16.mxu0 0
        %1090 = vmatpush1.bf16.msra.mxu0 0
        %1091 = vmatprep.subr.bf16.mxu0 0
        %1092 = vmatpush1.bf16.msra.mxu0 0
        %1093 = vmatprep.subr.bf16.mxu0 0
        %1094 = vmatpush1.bf16.msra.mxu0 0
        %1095 = vmatprep.subr.bf16.mxu0 0
        %1096 = vmatpush1.bf16.msra.mxu0 0
        %1097 = vmatprep.subr.bf16.mxu0 0
        %1098 = vmatpush1.bf16.msra.mxu0 0
        %1099 = vmatprep.subr.bf16.mxu0 0
        %1100 = vmatpush1.bf16.msra.mxu0 0
        %1101 = vmatprep.mubr.bf16.mxu0 0
        %1102 = vmatmul.mubr.bf16.gmra.mrb[0].mxu0 %v1064
        %v1103 = vpop.f32.mrb[0].mxu0
        %v1104 = vadd.f32 0.0, %v1103
        %v1105 = vpop.f32.mrb[0].mxu0
        %v1106 = vpop.f32.mrb[0].mxu0
        %v1107 = vpop.f32.mrb[0].mxu0
        %1108 = vdwg.mxu0
        %1110 = vrot.lane.b32.xlu0 %v1104, 16
        %v1111 = vpop.permute.xlu0 %1110
        %vm1113 = vcmask 261248
        %1114 = vst.msk [vmem:[#allocation3] sm:$0xff] %vm1113, %v1111
        %v1115 = vld [vmem:[#allocation3] sm:$0xff]
        %v1116 = vpack.c.bf16 %v1115, %v1115
        %v1117 = vld [vmem:[%s735] sm:$0xf]
        %v1118 = vld [vmem:[%s735 + $0x4] sm:$0xf]
        %v1119 = vld [vmem:[%s735 + $0x8] sm:$0xf]
        %v1120 = vld [vmem:[%s735 + $0xc] sm:$0xf]
        %v1121 = vld [vmem:[%s738] sm:$0x1]
        %v1123 = vlaneseq
        %v1124 = vshrl.u32 %v1123, 7
        %v1125 = vsub.s32 0, %v1124
        %v1126 = vrot.slane %v1121, %v1125
        %v1132 = vunpack.c.l.b16 %v1117
        %v1133 = vunpack.c.l.b16 %v1118
        %v1134 = vunpack.c.l.b16 %v1119
        %v1135 = vunpack.c.l.b16 %v1120
        %v1136 = vpack.c.b16 %v1133, %v1132
        %v1137 = vpack.c.b16 %v1135, %v1134
        %v1141 = vsel %vm831, %v1116, 0
        %1143 = vmatprep.subr.bf16.mxu0 0
        %1144 = vmatpush1.bf16.msra.mxu0 %v1136
        %1145 = vmatprep.subr.bf16.mxu0 0
        %1146 = vmatpush1.bf16.msra.mxu0 %v1137
        %1147 = vmatprep.subr.bf16.mxu0 0
        %1148 = vmatpush1.bf16.msra.mxu0 0
        %1149 = vmatprep.subr.bf16.mxu0 0
        %1150 = vmatpush1.bf16.msra.mxu0 0
        %1151 = vmatprep.subr.bf16.mxu0 0
        %1152 = vmatpush1.bf16.msra.mxu0 0
        %1153 = vmatprep.subr.bf16.mxu0 0
        %1154 = vmatpush1.bf16.msra.mxu0 0
        %1155 = vmatprep.subr.bf16.mxu0 0
        %1156 = vmatpush1.bf16.msra.mxu0 0
        %1157 = vmatprep.subr.bf16.mxu0 0
        %1158 = vmatpush1.bf16.msra.mxu0 0
        %1159 = vmatprep.subr.bf16.mxu0 0
        %1160 = vmatpush1.bf16.msra.mxu0 0
        %1161 = vmatprep.subr.bf16.mxu0 0
        %1162 = vmatpush1.bf16.msra.mxu0 0
        %1163 = vmatprep.subr.bf16.mxu0 0
        %1164 = vmatpush1.bf16.msra.mxu0 0
        %1165 = vmatprep.subr.bf16.mxu0 0
        %1166 = vmatpush1.bf16.msra.mxu0 0
        %1167 = vmatprep.subr.bf16.mxu0 0
        %1168 = vmatpush1.bf16.msra.mxu0 0
        %1169 = vmatprep.subr.bf16.mxu0 0
        %1170 = vmatpush1.bf16.msra.mxu0 0
        %1171 = vmatprep.subr.bf16.mxu0 0
        %1172 = vmatpush1.bf16.msra.mxu0 0
        %1173 = vmatprep.subr.bf16.mxu0 0
        %1174 = vmatpush1.bf16.msra.mxu0 0
        %1175 = vmatprep.mubr.bf16.mxu0 0
        %1176 = vmatmul.mubr.bf16.gmra.mrb[0].mxu0 %v1141
        %v1177 = vpop.f32.mrb[0].mxu0
        %v1178 = vadd.f32 %v1126, %v1177
        %v1179 = vpop.f32.mrb[0].mxu0
        %v1180 = vpop.f32.mrb[0].mxu0
        %v1181 = vpop.f32.mrb[0].mxu0
        %1182 = vdwg.mxu0
        %v1183 = vadd.f32 %v1178, %v805
        %v1184 = vld [vmem:[%s741] sm:$0x1]
        %v1185 = vld [vmem:[%s744] sm:$0x1]
        %v1186 = vsel %vm831, %v1183, 0.0
        %1187 = vadd.xlane.f32.xlu0 %v1186
        %v1188 = vpop.xlane.xlu0 %1187
        %v1189 = vrcp.pop 32.0
        %v1190 = vmul.f32 %v1188, %v1189
        %v1191 = vsub.f32 %v1183, %v1190
        %v1192 = vmul.f32 %v1191, %v1191
        %v1193 = vsel %vm831, %v1192, 0.0
        %1194 = vadd.xlane.f32.xlu0 %v1193
        %v1195 = vpop.xlane.xlu0 %1194
        %v1196 = vmul.f32 %v1195, %v1189
        %v1197 = vadd.f32 %v1196, 1e-12
        %v1198 = vrsqrt.pop %v1197
        %v1199 = vmul.f32 %v1191, %v1198
        %v1201 = vlaneseq
        %v1202 = vshrl.u32 %v1201, 7
        %v1203 = vsub.s32 0, %v1202
        %v1204 = vrot.slane %v1184, %v1203
        %v1206 = vmul.f32 %v1199, %v1204
        %v1208 = vlaneseq
        %v1209 = vshrl.u32 %v1208, 7
        %v1210 = vsub.s32 0, %v1209
        %v1211 = vrot.slane %v1185, %v1210
        %v1213 = vadd.f32 %v1206, %v1211
        %v1214 = vpack.c.bf16 %v1213, %v1213
        %v1215 = vld [vmem:[%s749] sm:$0xf]
        %v1216 = vld [vmem:[%s749 + $0x4] sm:$0xf]
        %v1217 = vld [vmem:[%s749 + $0x8] sm:$0xf]
        %v1218 = vld [vmem:[%s749 + $0xc] sm:$0xf]
        %v1219 = vld [vmem:[%s752] sm:$0x1]
        %v1221 = vlaneseq
        %v1222 = vshrl.u32 %v1221, 7
        %v1223 = vsub.s32 0, %v1222
        %v1224 = vrot.slane %v1219, %v1223
        %v1230 = vunpack.c.l.b16 %v1215
        %v1231 = vunpack.c.l.b16 %v1216
        %v1232 = vunpack.c.l.b16 %v1217
        %v1233 = vunpack.c.l.b16 %v1218
        %v1234 = vpack.c.b16 %v1231, %v1230
        %v1235 = vpack.c.b16 %v1233, %v1232
        %v1239 = vsel %vm831, %v1214, 0
        %1241 = vmatprep.subr.bf16.mxu0 0
        %1242 = vmatpush1.bf16.msra.mxu0 %v1234
        %1243 = vmatprep.subr.bf16.mxu0 0
        %1244 = vmatpush1.bf16.msra.mxu0 %v1235
        %1245 = vmatprep.subr.bf16.mxu0 0
        %1246 = vmatpush1.bf16.msra.mxu0 0
        %1247 = vmatprep.subr.bf16.mxu0 0
        %1248 = vmatpush1.bf16.msra.mxu0 0
        %1249 = vmatprep.subr.bf16.mxu0 0
        %1250 = vmatpush1.bf16.msra.mxu0 0
        %1251 = vmatprep.subr.bf16.mxu0 0
        %1252 = vmatpush1.bf16.msra.mxu0 0
        %1253 = vmatprep.subr.bf16.mxu0 0
        %1254 = vmatpush1.bf16.msra.mxu0 0
        %1255 = vmatprep.subr.bf16.mxu0 0
        %1256 = vmatpush1.bf16.msra.mxu0 0
        %1257 = vmatprep.subr.bf16.mxu0 0
        %1258 = vmatpush1.bf16.msra.mxu0 0
        %1259 = vmatprep.subr.bf16.mxu0 0
        %1260 = vmatpush1.bf16.msra.mxu0 0
        %1261 = vmatprep.subr.bf16.mxu0 0
        %1262 = vmatpush1.bf16.msra.mxu0 0
        %1263 = vmatprep.subr.bf16.mxu0 0
        %1264 = vmatpush1.bf16.msra.mxu0 0
        %1265 = vmatprep.subr.bf16.mxu0 0
        %1266 = vmatpush1.bf16.msra.mxu0 0
        %1267 = vmatprep.subr.bf16.mxu0 0
        %1268 = vmatpush1.bf16.msra.mxu0 0
        %1269 = vmatprep.subr.bf16.mxu0 0
        %1270 = vmatpush1.bf16.msra.mxu0 0
        %1271 = vmatprep.subr.bf16.mxu0 0
        %1272 = vmatpush1.bf16.msra.mxu0 0
        %1273 = vmatprep.mubr.bf16.mxu0 0
        %1274 = vmatmul.mubr.bf16.gmra.mrb[0].mxu0 %v1239
        %v1275 = vpop.f32.mrb[0].mxu0
        %v1276 = vadd.f32 %v1224, %v1275
        %v1277 = vpop.f32.mrb[0].mxu0
        %v1278 = vpop.f32.mrb[0].mxu0
        %v1279 = vpop.f32.mrb[0].mxu0
        %1280 = vdwg.mxu0
        %v1281 = vmul.f32 %v1276, 0.5
        %v1282 = vmul.f32 %v1276, 0.044715
        %v1283 = vmul.f32 %v1282, %v1276
        %v1284 = vmul.f32 %v1283, %v1276
        %v1285 = vadd.f32 %v1276, %v1284
        %v1286 = vmul.f32 %v1285, 0.7978846
        %v1287 = vtanh.pop %v1286
        %v1288 = vadd.f32 %v1287, 1.0
        %v1289 = vmul.f32 %v1281, %v1288
        %v1290 = vpack.c.bf16 %v1289, %v1289
        %v1291 = vld [vmem:[%s757] sm:$0xf]
        %v1292 = vld [vmem:[%s757 + $0x4] sm:$0xf]
        %v1293 = vld [vmem:[%s757 + $0x8] sm:$0xf]
        %v1294 = vld [vmem:[%s757 + $0xc] sm:$0xf]
        %v1295 = vld [vmem:[%s757 + $0x10] sm:$0xf]
        %v1296 = vld [vmem:[%s757 + $0x14] sm:$0xf]
        %v1297 = vld [vmem:[%s757 + $0x18] sm:$0xf]
        %v1298 = vld [vmem:[%s757 + $0x1c] sm:$0xf]
        %v1299 = vld [vmem:[%s760] sm:$0x1]
        %v1301 = vlaneseq
        %v1302 = vshrl.u32 %v1301, 7
        %v1303 = vsub.s32 0, %v1302
        %v1304 = vrot.slane %v1299, %v1303
        %v1314 = vunpack.c.l.b16 %v1291
        %v1315 = vunpack.c.l.b16 %v1292
        %v1316 = vunpack.c.l.b16 %v1293
        %v1317 = vunpack.c.l.b16 %v1294
        %v1318 = vunpack.c.l.b16 %v1295
        %v1319 = vunpack.c.l.b16 %v1296
        %v1320 = vunpack.c.l.b16 %v1297
        %v1321 = vunpack.c.l.b16 %v1298
        %v1322 = vpack.c.b16 %v1315, %v1314
        %v1323 = vpack.c.b16 %v1317, %v1316
        %v1324 = vpack.c.b16 %v1319, %v1318
        %v1325 = vpack.c.b16 %v1321, %v1320
        %vm1330 = vcmask 523264
        %v1332 = vsel %vm1330, %v1290, 0
        %1334 = vmatprep.subr.bf16.mxu0 0
        %1335 = vmatpush1.bf16.msra.mxu0 %v1322
        %1336 = vmatprep.subr.bf16.mxu0 0
        %1337 = vmatpush1.bf16.msra.mxu0 %v1323
        %1338 = vmatprep.subr.bf16.mxu0 0
        %1339 = vmatpush1.bf16.msra.mxu0 %v1324
        %1340 = vmatprep.subr.bf16.mxu0 0
        %1341 = vmatpush1.bf16.msra.mxu0 %v1325
        %1342 = vmatprep.subr.bf16.mxu0 0
        %1343 = vmatpush1.bf16.msra.mxu0 0
        %1344 = vmatprep.subr.bf16.mxu0 0
        %1345 = vmatpush1.bf16.msra.mxu0 0
        %1346 = vmatprep.subr.bf16.mxu0 0
        %1347 = vmatpush1.bf16.msra.mxu0 0
        %1348 = vmatprep.subr.bf16.mxu0 0
        %1349 = vmatpush1.bf16.msra.mxu0 0
        %1350 = vmatprep.subr.bf16.mxu0 0
        %1351 = vmatpush1.bf16.msra.mxu0 0
        %1352 = vmatprep.subr.bf16.mxu0 0
        %1353 = vmatpush1.bf16.msra.mxu0 0
        %1354 = vmatprep.subr.bf16.mxu0 0
        %1355 = vmatpush1.bf16.msra.mxu0 0
        %1356 = vmatprep.subr.bf16.mxu0 0
        %1357 = vmatpush1.bf16.msra.mxu0 0
        %1358 = vmatprep.subr.bf16.mxu0 0
        %1359 = vmatpush1.bf16.msra.mxu0 0
        %1360 = vmatprep.subr.bf16.mxu0 0
        %1361 = vmatpush1.bf16.msra.mxu0 0
        %1362 = vmatprep.subr.bf16.mxu0 0
        %1363 = vmatpush1.bf16.msra.mxu0 0
        %1364 = vmatprep.subr.bf16.mxu0 0
        %1365 = vmatpush1.bf16.msra.mxu0 0
        %1366 = vmatprep.mubr.bf16.mxu0 0
        %1367 = vmatmul.mubr.bf16.gmra.mrb[0].mxu0 %v1332
        %v1368 = vpop.f32.mrb[0].mxu0
        %v1369 = vadd.f32 %v1304, %v1368
        %v1370 = vpop.f32.mrb[0].mxu0
        %v1371 = vpop.f32.mrb[0].mxu0
        %v1372 = vpop.f32.mrb[0].mxu0
        %1373 = vdwg.mxu0
        %v1374 = vadd.f32 %v1369, %v1213
        %v1375 = vld [vmem:[%s763] sm:$0x1]
        %v1376 = vld [vmem:[%s766] sm:$0x1]
        %v1377 = vsel %vm831, %v1374, 0.0
        %1378 = vadd.xlane.f32.xlu0 %v1377
        %v1379 = vpop.xlane.xlu0 %1378
        %v1380 = vmul.f32 %v1379, %v1189
        %v1381 = vsub.f32 %v1374, %v1380
        %v1382 = vmul.f32 %v1381, %v1381
        %v1383 = vsel %vm831, %v1382, 0.0
        %1384 = vadd.xlane.f32.xlu0 %v1383
        %v1385 = vpop.xlane.xlu0 %1384
        %v1386 = vmul.f32 %v1385, %v1189
        %v1387 = vadd.f32 %v1386, 1e-12
        %v1388 = vrsqrt.pop %v1387
        %v1389 = vmul.f32 %v1381, %v1388
        %v1391 = vlaneseq
        %v1392 = vshrl.u32 %v1391, 7
        %v1393 = vsub.s32 0, %v1392
        %v1394 = vrot.slane %v1375, %v1393
        %v1396 = vmul.f32 %v1389, %v1394
        %v1398 = vlaneseq
        %v1399 = vshrl.u32 %v1398, 7
        %v1400 = vsub.s32 0, %v1399
        %v1401 = vrot.slane %v1376, %v1400
        %v1403 = vadd.f32 %v1396, %v1401
        %1404 = vst.msk [vmem:[#allocation2] sm:$0xff] %vm831, %v1403
        %p1405 = scmp.eq.s32.totalorder %s39, 1
        // Predicated region
        $region97: #{tpu_custom_call.1} parent=83 // pred_check
          %p1406 = pneg %p1405
        $region98: #{tpu_custom_call.1} parent=83 // pred_check_branch
          %1408 = sbr.rel (%p1406) target = $region100
        $region99: #{tpu_custom_call.1} parent=83 // pred_region
          %vm1409 = vcmask 253952
          %1410 = vst.msk [vmem:[%s719] sm:$0x1] %vm1409, %v1403
        $region100: #{tpu_custom_call.1} parent=83 // pred_fallthru
          _
        %s1411 = sand.u32 %s460, 1
        %s1412 = scalar_lea.sflag [#allocation6], %s1411
        %s1413 = sand.u32 %s460, 1
        %s1414 = scalar_lea.vmem [#allocation9], %s1413
        // Predicated region
        $region101: #{tpu_custom_call.1} parent=83 // pred_check
          %p1415 = pneg %p470
        $region102: #{tpu_custom_call.1} parent=83 // pred_check_branch
          %1417 = sbr.rel (%p1415) target = $region104
        $region103: #{tpu_custom_call.1} parent=83 // pred_region
          %s1419 = ssub.s32 16, 16
          %1420 = vsyncadd %s1412, %s1419
          %s1421 = smul.addr %s38, 16
          %s1422 = scalar_lea.hbm %s16, %s1421
          %s1424 = sshll.u32 %s1414, 4
          %s1425 = int_to_ptr.vmem [resolvable:$true] %s1424
          %1427 = dma.vmem_to_hbm [thread:$0]  %s1425, 16, %s1422, %s1412
        $region104: #{tpu_custom_call.1} parent=83 // pred_fallthru
          _
      $region84: #{tpu_custom_call.1} parent=5 // pred_fallthru
        _
      %p1428 = scmp.le.s32.totalorder 2, %s29
      // Predicated region
      $region105: #{tpu_custom_call.1} parent=5 // pred_check
        %p1429 = pneg %p1428
      $region106: #{tpu_custom_call.1} parent=5 // pred_check_branch
        %1431 = sbr.rel (%p1429) target = $region108
      $region107: #{tpu_custom_call.1} parent=5 // pred_region
        %s1432 = ssub.s32 %s29, 2
        // Predicated region
        $region109: #{tpu_custom_call.1} parent=107 // pred_check
          %p1433 = pneg %p476
        $region110: #{tpu_custom_call.1} parent=107 // pred_check_branch
          %1435 = sbr.rel (%p1433) target = $region112
        $region111: #{tpu_custom_call.1} parent=107 // pred_region
          %s1436 = sand.u32 %s461, 1
          %s1437 = scalar_lea.sflag [#allocation6], %s1436
          %s1438 = sand.u32 %s461, 1
          %s1439 = scalar_lea.vmem [#allocation9], %s1438
          %1440 = dma.done %s1437, 16
        $region112: #{tpu_custom_call.1} parent=107 // pred_fallthru
          _
      $region108: #{tpu_custom_call.1} parent=5 // pred_fallthru
        _
    $region6: #{tpu_custom_call.1} parent=1 // loop_footer
      %s33 = sadd.s32 1, %s29
    $region7: #{tpu_custom_call.1} parent=1 // loop_footer_branch
      %28 = sbr.rel target = $region3
    $region8: #{tpu_custom_call.1} parent=1 // loop_exit
      _
    %1441 = vsyncpa [#allocation5], 1
    %s1442 = scalar_lea.sflag [#allocation5], 1
    %1443 = vsyncpa %s1442, 1
    %1444 = vsyncpa [#allocation8], 1
    %1445 = vsyncpa [#allocation6], 1
    %s1446 = scalar_lea.sflag [#allocation6], 1
    %1447 = vsyncpa %s1446, 1

</llo_original>
